<compile_context>
chip_gen: v6e
topology: v6e:2x2x1
jax: 0.10.0
libtpu: 0.0.40
codegen_flags: <defaults>
</compile_context>

<pallas_src>
import functools

import jax
import jax.numpy as jnp
from jax.experimental import pallas as pl
from jax.experimental.pallas import tpu as pltpu

LANE = 128


# --------------------------- shared in-kernel math ---------------------------

def _excite_from_pooled(p_all, amat_ref, bsel_ref, wg_ref, bg_ref,
                        wcat_ref, msel_ref, ball_ref):
    """pooled column (3C,1) f32 -> sigmoid excitation vector (3C,1) f32."""
    f32 = jnp.float32
    c3 = ball_ref.shape[0]
    num_k = bsel_ref.shape[1]

    # Regroup pooled(3C) -> GCN node matrix x(D,K): ONE selection matmul
    # (x[d,k] = pooled[k*D+d]), reshape/transpose-free.
    x = jnp.dot(amat_ref[...], p_all * bsel_ref[...], preferred_element_type=f32)

    # CascadeGCNet (loop statically unrolled) + final ReLU.
    for i in range(wg_ref.shape[0]):
        adj = jax.lax.dot_general(x, x, (((0,), (0,)), ((), ())),
                                  preferred_element_type=f32)                # (K,K)
        h = jnp.dot(wg_ref[i], x, preferred_element_type=f32) + bg_ref[i]    # (D,K)
        x = jnp.dot(h, adj, preferred_element_type=f32)                      # (D,K)
    x = jnp.maximum(x, 0.0)

    # Three Linear(+Sigmoid) heads on the D-major flatten of x: one stacked
    # MXU matmul, a VPU mask, an XLU lane-reduce and K sublane-aligned adds.
    z = jnp.dot(wcat_ref[...], x, preferred_element_type=f32)                # (K*3C, K)
    ycol = jnp.sum(z * msel_ref[...], axis=-1, keepdims=True)                # (K*3C, 1)
    e_pre = ball_ref[...].astype(f32)                                        # (3C, 1)
    for k in range(num_k):
        e_pre = e_pre + ycol[k * c3:(k + 1) * c3, :]
    return jax.nn.sigmoid(e_pre)                                             # (3C, 1)


# ------------------------------ fused path kernel ----------------------------

def _fused_channel_gcn_kernel(fv_ref, fd_ref, ft_ref,
                              amat_ref, bsel_ref, wg_ref, bg_ref,
                              wcat_ref, msel_ref, ball_ref,
                              ov_ref, od_ref, ot_ref, *, inv_hw):
    f32 = jnp.float32
    C = fv_ref.shape[1]
    hwp = fv_ref.shape[2]
    dt = fv_ref.dtype

    # Global average pool on the MXU (ones column; zero-padded lanes contribute
    # nothing; divide by the true HW) -> one concatenated (3C,1) column.
    ones_col = jnp.ones((hwp, 1), dtype=dt)
    p = [jnp.dot(f_ref[0], ones_col, preferred_element_type=f32) * inv_hw
         for f_ref in (fv_ref, fd_ref, ft_ref)]
    p_all = jnp.concatenate(p, axis=0)                                       # (3C, 1)

    e_all = _excite_from_pooled(p_all, amat_ref, bsel_ref, wg_ref, bg_ref,
                                wcat_ref, msel_ref, ball_ref)
    # Excitation multiply stays in the streamed dtype (bf16-friendly).
    e = e_all.astype(dt)
    ov_ref[0] = (e[0:C, :] * fv_ref[0]).astype(ov_ref.dtype)
    od_ref[0] = (e[C:2 * C, :] * fd_ref[0]).astype(od_ref.dtype)
    ot_ref[0] = (e[2 * C:3 * C, :] * ft_ref[0]).astype(ot_ref.dtype)


# ------------------------------ split path kernels ---------------------------

def _pool_gcn_kernel(fv_ref, fd_ref, ft_ref,
                     amat_ref, bsel_ref, wg_ref, bg_ref,
                     wcat_ref, msel_ref, ball_ref,
                     e1_ref, e2_ref, e3_ref, acc_ref, *, inv_hw):
    f32 = jnp.float32
    C = fv_ref.shape[1]
    hwt = fv_ref.shape[2]
    t = pl.program_id(1)

    @pl.when(t == 0)
    def _():
        acc_ref[...] = jnp.zeros_like(acc_ref)

    ones_col = jnp.ones((hwt, 1), dtype=fv_ref.dtype)
    for m, f_ref in enumerate((fv_ref, fd_ref, ft_ref)):
        acc_ref[m] = acc_ref[m] + jnp.dot(f_ref[0], ones_col,
                                          preferred_element_type=f32)

    @pl.when(t == pl.num_programs(1) - 1)
    def _():
        p_all = jnp.concatenate([acc_ref[0], acc_ref[1], acc_ref[2]],
                                axis=0) * inv_hw                              # (3C,1)
        e_all = _excite_from_pooled(p_all, amat_ref, bsel_ref, wg_ref, bg_ref,
                                    wcat_ref, msel_ref, ball_ref)
        e1_ref[0] = e_all[0:C, :]
        e2_ref[0] = e_all[C:2 * C, :]
        e3_ref[0] = e_all[2 * C:3 * C, :]


def _scale_kernel(e1_ref, e2_ref, e3_ref, fv_ref, fd_ref, ft_ref,
                  ov_ref, od_ref, ot_ref):
    dt = fv_ref.dtype
    ov_ref[0] = (e1_ref[0].astype(dt) * fv_ref[0]).astype(ov_ref.dtype)
    od_ref[0] = (e2_ref[0].astype(dt) * fd_ref[0]).astype(od_ref.dtype)
    ot_ref[0] = (e3_ref[0].astype(dt) * ft_ref[0]).astype(ot_ref.dtype)


# ----------------------------------- wrapper ---------------------------------

def _full_spec(shape, n_grid):
    nd = len(shape)
    if n_grid == 1:
        return pl.BlockSpec(shape, lambda b, _nd=nd: (0,) * _nd)
    return pl.BlockSpec(shape, lambda b, t, _nd=nd: (0,) * _nd)


def channel_gcn_forward(F_v, F_d, F_t, params, num, *,
                        force_split=False,
                        fused_vmem_budget=40 << 20,     # conservative for v7x 64 MiB
                        tile_vmem_budget=24 << 20):
    B, C, H, W = F_v.shape
    if (3 * C) % num != 0:
        raise ValueError(f"3*dim_a ({3 * C}) must be divisible by num ({num})")
    HW = H * W
    C3 = 3 * C
    K = num
    D = C3 // num
    dt = F_v.dtype
    itemsize = jnp.dtype(dt).itemsize
    f32 = jnp.float32
    inv_hw = 1.0 / float(HW)

    # ---- host-side constant folding (tiny, O(C^2)) ----
    j = jnp.arange(C3)
    amat = (j[None, :] % D == jnp.arange(D)[:, None]).astype(f32)            # (D, 3C)
    bsel = (j[:, None] // D == jnp.arange(K)[None, :]).astype(f32)           # (3C, K)

    # Fold the D-major flatten + three nn.Linear heads into per-node-column
    # weights, stacked along rows:  Wcat[k*3C+o, d] * x[d, k].
    w_heads = jnp.stack([params["fc1_w"], params["fc2_w"],
                         params["fc3_w"]]).astype(f32)                       # (3, C, C)
    d_ar, k_ar, o_ar = jnp.arange(D), jnp.arange(K), jnp.arange(C)
    jj = d_ar[:, None] * K + k_ar[None, :]            # flat index of x[d,k]
    mm = jj // C                                      # FC head
    cc = jj % C                                       # in-feature within head
    wsel = w_heads[mm, :, cc]                         # (D, K, C)
    rows = mm[:, :, None] * C + o_ar[None, None, :]   # (D, K, C) output rows
    wfold = jnp.zeros((K, C3, D), f32).at[
        jnp.broadcast_to(k_ar[None, :, None], (D, K, C)),
        rows,
        jnp.broadcast_to(d_ar[:, None, None], (D, K, C)),
    ].set(wsel)                                       # (K, 3C, D)
    wcat = wfold.reshape(K * C3, D)                   # (K*3C, D)
    msel = jnp.repeat(jnp.eye(K, dtype=f32), C3, axis=0)                     # (K*3C, K)
    ball = jnp.concatenate([params["fc1_b"][0], params["fc2_b"][0],
                            params["fc3_b"][0]]).reshape(C3, 1).astype(f32)
    wg = params["gcn_w"].astype(f32)                  # (LOOP, D, D)
    bg = params["gcn_b"].astype(f32)                  # (LOOP, D, 1)
    LOOP = wg.shape[0]
    const_args = (amat, bsel, wg, bg, wcat, msel, ball)

    def const_specs(n_grid):
        return [_full_spec(a.shape, n_grid) for a in const_args]

    def pad_to(x3, target):
        padn = target - x3.shape[-1]
        return x3 if padn == 0 else jnp.pad(x3, ((0, 0), (0, 0), (0, padn)))

    # Lane-dense (B, C, HW) views (contiguous collapse of H, W).
    fv = F_v.reshape(B, C, HW)
    fd = F_d.reshape(B, C, HW)
    ft = F_t.reshape(B, C, HW)

    hwp_min = pl.cdiv(HW, LANE) * LANE
    fused_bytes = 2 * 6 * C * hwp_min * itemsize      # double-buffered 3 in + 3 out
    use_fused = (not force_split) and (fused_bytes <= fused_vmem_budget)

    gcn_flops = 2 * (LOOP * (2 * D * K * K + 2 * D * D * K)
                     + D * K * C3 + 2 * K * C3 * D)

    if use_fused:
        HWp = hwp_min
        fvp, fdp, ftp = (pad_to(a, HWp) for a in (fv, fd, ft))
        feat_spec = pl.BlockSpec((1, C, HWp), lambda b: (b, 0, 0))
        cost = pl.CostEstimate(
            flops=int(B * (9 * C * HWp + gcn_flops)),
            transcendentals=int(B * C3),
            bytes_accessed=int(6 * B * C * HWp * itemsize))
        kern = functools.partial(_fused_channel_gcn_kernel, inv_hw=inv_hw)
        ov, od, ot = pl.pallas_call(
            kern,
            out_shape=tuple(jax.ShapeDtypeStruct((B, C, HWp), dt) for _ in range(3)),
            grid=(B,),
            in_specs=[feat_spec] * 3 + const_specs(1),
            out_specs=(feat_spec,) * 3,
            compiler_params=pltpu.CompilerParams(
                dimension_semantics=("parallel",),
                vmem_limit_bytes=56 * 1024 * 1024),
            cost_estimate=cost,
        )(fvp, fdp, ftp, *const_args)
    else:
        # ---- two-kernel split: pool+GCN+FC (reduction over HW tiles), then a
        # pure streaming scale pass with a fully parallel (B, HW_tiles) grid.
        max_hwt = max(LANE, (tile_vmem_budget // (12 * C * itemsize)) // LANE * LANE)
        HWt = int(min(max_hwt, hwp_min))
        HWp = pl.cdiv(HW, HWt) * HWt
        nT = HWp // HWt
        fvp, fdp, ftp = (pad_to(a, HWp) for a in (fv, fd, ft))

        feat_spec = pl.BlockSpec((1, C, HWt), lambda b, t: (b, 0, t))
        e_spec = pl.BlockSpec((1, C, 1), lambda b, t: (b, 0, 0))

        pool_cost = pl.CostEstimate(
            flops=int(B * (6 * C * HWp + gcn_flops)),
            transcendentals=int(B * C3),
            bytes_accessed=int(3 * B * C * HWp * itemsize))
        kern_a = functools.partial(_pool_gcn_kernel, inv_hw=inv_hw)
        e1, e2, e3 = pl.pallas_call(
            kern_a,
            out_shape=tuple(jax.ShapeDtypeStruct((B, C, 1), f32) for _ in range(3)),
            grid=(B, nT),
            in_specs=[feat_spec] * 3 + const_specs(2),
            out_specs=(e_spec,) * 3,
            scratch_shapes=[pltpu.VMEM((3, C, 1), f32)],
            compiler_params=pltpu.CompilerParams(
                dimension_semantics=("parallel", "arbitrary"),
                vmem_limit_bytes=48 * 1024 * 1024),
            cost_estimate=pool_cost,
        )(fvp, fdp, ftp, *const_args)

        scale_cost = pl.CostEstimate(
            flops=int(3 * B * C * HWp),
            transcendentals=0,
            bytes_accessed=int(6 * B * C * HWp * itemsize))
        ov, od, ot = pl.pallas_call(
            _scale_kernel,
            out_shape=tuple(jax.ShapeDtypeStruct((B, C, HWp), dt) for _ in range(3)),
            grid=(B, nT),
            in_specs=[e_spec] * 3 + [feat_spec] * 3,
            out_specs=(feat_spec,) * 3,
            compiler_params=pltpu.CompilerParams(
                dimension_semantics=("parallel", "parallel"),
                vmem_limit_bytes=48 * 1024 * 1024),
            cost_estimate=scale_cost,
        )(e1, e2, e3, fvp, fdp, ftp)

    outs = (ov, od, ot)
    if HWp != HW:
        outs = tuple(o[:, :, :HW] for o in outs)
    return tuple(o.reshape(B, C, H, W) for o in outs)


# ---------------------------- params & JAX reference --------------------------

def init_params(key, dim_a, num, loop=2):
    D = 3 * dim_a // num
    ks = jax.random.split(key, 10)

    def lin(k, out_d, in_d):
        return (jax.random.normal(k, (out_d, in_d), jnp.float32)
                / jnp.sqrt(jnp.float32(in_d)))

    gcn_w = jnp.stack([lin(ks[i], D, D) for i in range(loop)])
    gcn_b = jax.random.normal(ks[2], (loop, D, 1), jnp.float32) * 0.1
    return {
        "gcn_w": gcn_w,
        "gcn_b": gcn_b,
        "fc1_w": lin(ks[3], dim_a, dim_a),
        "fc1_b": jax.random.normal(ks[4], (1, dim_a), jnp.float32) * 0.1,
        "fc2_w": lin(ks[5], dim_a, dim_a),
        "fc2_b": jax.random.normal(ks[6], (1, dim_a), jnp.float32) * 0.1,
        "fc3_w": lin(ks[7], dim_a, dim_a),
        "fc3_b": jax.random.normal(ks[8], (1, dim_a), jnp.float32) * 0.1,
    }


def reference(F_v, F_d, F_t, params, num):
    # Plain-JAX mirror of the PyTorch forward (correctness check).
    B, C, _, _ = F_v.shape
    dim_a = C
    comb = jnp.concatenate([F_v, F_d, F_t], axis=1)
    pooled = comb.mean(axis=(2, 3))                       # (B, 3C)
    x = pooled.reshape(B, num, -1).transpose(0, 2, 1)     # (B, D, K)
    wg, bg = params["gcn_w"], params["gcn_b"]
    for i in range(wg.shape[0]):
        adj = jnp.einsum('bdk,bdl->bkl', x, x)
        h = jnp.einsum('od,bdk->bok', wg[i], x) + bg[i][None]
        x = jnp.einsum('bdk,bkl->bdl', h, adj)
    x = jnp.maximum(x, 0.0)
    feat = x.reshape(B, -1)                               # D-major flatten

    def fc(f, w, b):
        return jax.nn.sigmoid(f @ w.T + b)

    e1 = fc(feat[:, :dim_a], params["fc1_w"], params["fc1_b"])
    e2 = fc(feat[:, dim_a:2 * dim_a], params["fc2_w"], params["fc2_b"])
    e3 = fc(feat[:, 2 * dim_a:], params["fc3_w"], params["fc3_b"])
    return (e1[:, :, None, None] * F_v,
            e2[:, :, None, None] * F_d,
            e3[:, :, None, None] * F_t)


# ------------------------------------- main -----------------------------------

def _run_case(case_idx, B, dim_a, H, W, num, **fwd_kwargs):
    k1, k2, k3, kp = jax.random.split(
        jax.random.fold_in(jax.random.PRNGKey(0), case_idx), 4)
    F_v = jax.random.normal(k1, (B, dim_a, H, W), jnp.float32)
    F_d = jax.random.normal(k2, (B, dim_a, H, W), jnp.float32)
    F_t = jax.random.normal(k3, (B, dim_a, H, W), jnp.float32)
    params = init_params(kp, dim_a, num)

    outs = channel_gcn_forward(F_v, F_d, F_t, params, num, **fwd_kwargs)
    outs = jax.block_until_ready(outs)
    refs = reference(F_v, F_d, F_t, params, num)
    for o, r in zip(outs, refs):
        assert o.shape == r.shape, (o.shape, r.shape)
        err = float(jnp.max(jnp.abs(o - r)))
        assert err < 1e-3, err


if __name__ == "__main__":
    # 1) fused path, lane-dense HW (16x16 = 256).
    _run_case(0, 2, 16, 16, 16, 4)
    # 2) forced two-kernel split with 2 HW tiles (exercises the large-shape path).
    _run_case(1, 2, 16, 16, 16, 4, force_split=True, tile_vmem_budget=100_000)
    # 3) fused path with non-128-multiple HW (12x12 = 144, padded to 256).
    _run_case(2, 2, 16, 12, 12, 4)
    print("KERNEL_OK")
</pallas_src>

<mosaic_0001>
module attributes {stable_mosaic.version = 11 : i64} {
  func.func @_fused_channel_gcn_kernel(%arg0: i32, %arg1: memref<1x16x256xf32, #tpu.memory_space<vmem>>, %arg2: memref<1x16x256xf32, #tpu.memory_space<vmem>>, %arg3: memref<1x16x256xf32, #tpu.memory_space<vmem>>, %arg4: memref<12x48xf32, #tpu.memory_space<vmem>>, %arg5: memref<48x4xf32, #tpu.memory_space<vmem>>, %arg6: memref<2x12x12xf32, #tpu.memory_space<vmem>>, %arg7: memref<2x12x1xf32, #tpu.memory_space<vmem>>, %arg8: memref<192x12xf32, #tpu.memory_space<vmem>>, %arg9: memref<192x4xf32, #tpu.memory_space<vmem>>, %arg10: memref<48x1xf32, #tpu.memory_space<vmem>>, %arg11: memref<1x16x256xf32, #tpu.memory_space<vmem>>, %arg12: memref<1x16x256xf32, #tpu.memory_space<vmem>>, %arg13: memref<1x16x256xf32, #tpu.memory_space<vmem>>) attributes {dimension_semantics = [#tpu.dimension_semantics<parallel>], iteration_bounds = array<i64: 2>, scalar_prefetch = 0 : i64, scratch_operands = 0 : i64, tpu.core_type = #tpu.core_type<tc>, window_params = [{transform_indices = @transform_0, window_bounds = array<i64: 1, 16, 256>}, {transform_indices = @transform_1, window_bounds = array<i64: 1, 16, 256>}, {transform_indices = @transform_2, window_bounds = array<i64: 1, 16, 256>}, {pipeline_mode = #tpu.pipeline_mode<synchronous>, transform_indices = @transform_3, window_bounds = array<i64: 12, 48>}, {pipeline_mode = #tpu.pipeline_mode<synchronous>, transform_indices = @transform_4, window_bounds = array<i64: 48, 4>}, {pipeline_mode = #tpu.pipeline_mode<synchronous>, transform_indices = @transform_5, window_bounds = array<i64: 2, 12, 12>}, {pipeline_mode = #tpu.pipeline_mode<synchronous>, transform_indices = @transform_6, window_bounds = array<i64: 2, 12, 1>}, {pipeline_mode = #tpu.pipeline_mode<synchronous>, transform_indices = @transform_7, window_bounds = array<i64: 192, 12>}, {pipeline_mode = #tpu.pipeline_mode<synchronous>, transform_indices = @transform_8, window_bounds = array<i64: 192, 4>}, {pipeline_mode = #tpu.pipeline_mode<synchronous>, transform_indices = @transform_9, window_bounds = array<i64: 48, 1>}, {transform_indices = @transform_10, window_bounds = array<i64: 1, 16, 256>}, {transform_indices = @transform_11, window_bounds = array<i64: 1, 16, 256>}, {transform_indices = @transform_12, window_bounds = array<i64: 1, 16, 256>}]} {
    %cst = arith.constant 1.000000e+00 : f32
    %0 = vector.broadcast %cst : f32 to vector<256x1xf32>
    %c0 = arith.constant 0 : index
    %c0_0 = arith.constant 0 : index
    %c0_1 = arith.constant 0 : index
    %1 = vector.load %arg1[%c0, %c0_0, %c0_1] : memref<1x16x256xf32, #tpu.memory_space<vmem>>, vector<1x16x256xf32>
    %2 = vector.shape_cast %1 : vector<1x16x256xf32> to vector<16x256xf32>
    %cst_2 = arith.constant dense<0.000000e+00> : vector<16x1xf32>
    %3 = tpu.matmul %2, %0, %cst_2 {dimension_numbers = #tpu.dot_dimension_numbers<[1], [0], [0], [1], [0, 0, 1, 1], [], []>} : vector<16x256xf32>, vector<256x1xf32>, vector<16x1xf32> -> vector<16x1xf32>
    %cst_3 = arith.constant 3.906250e-03 : f32
    %4 = vector.broadcast %cst_3 : f32 to vector<16x1xf32>
    %5 = arith.mulf %3, %4 : vector<16x1xf32>
    %c0_4 = arith.constant 0 : index
    %c0_5 = arith.constant 0 : index
    %c0_6 = arith.constant 0 : index
    %6 = vector.load %arg2[%c0_4, %c0_5, %c0_6] : memref<1x16x256xf32, #tpu.memory_space<vmem>>, vector<1x16x256xf32>
    %7 = vector.shape_cast %6 : vector<1x16x256xf32> to vector<16x256xf32>
    %cst_7 = arith.constant dense<0.000000e+00> : vector<16x1xf32>
    %8 = tpu.matmul %7, %0, %cst_7 {dimension_numbers = #tpu.dot_dimension_numbers<[1], [0], [0], [1], [0, 0, 1, 1], [], []>} : vector<16x256xf32>, vector<256x1xf32>, vector<16x1xf32> -> vector<16x1xf32>
    %cst_8 = arith.constant 3.906250e-03 : f32
    %9 = vector.broadcast %cst_8 : f32 to vector<16x1xf32>
    %10 = arith.mulf %8, %9 : vector<16x1xf32>
    %c0_9 = arith.constant 0 : index
    %c0_10 = arith.constant 0 : index
    %c0_11 = arith.constant 0 : index
    %11 = vector.load %arg3[%c0_9, %c0_10, %c0_11] : memref<1x16x256xf32, #tpu.memory_space<vmem>>, vector<1x16x256xf32>
    %12 = vector.shape_cast %11 : vector<1x16x256xf32> to vector<16x256xf32>
    %cst_12 = arith.constant dense<0.000000e+00> : vector<16x1xf32>
    %13 = tpu.matmul %12, %0, %cst_12 {dimension_numbers = #tpu.dot_dimension_numbers<[1], [0], [0], [1], [0, 0, 1, 1], [], []>} : vector<16x256xf32>, vector<256x1xf32>, vector<16x1xf32> -> vector<16x1xf32>
    %cst_13 = arith.constant 3.906250e-03 : f32
    %14 = vector.broadcast %cst_13 : f32 to vector<16x1xf32>
    %15 = arith.mulf %13, %14 : vector<16x1xf32>
    %16 = tpu.concatenate %5, %10, %15 in 0 : vector<16x1xf32>, vector<16x1xf32>, vector<16x1xf32> -> vector<48x1xf32>
    %c0_14 = arith.constant 0 : index
    %c0_15 = arith.constant 0 : index
    %17 = vector.load %arg4[%c0_14, %c0_15] : memref<12x48xf32, #tpu.memory_space<vmem>>, vector<12x48xf32>
    %c0_16 = arith.constant 0 : index
    %c0_17 = arith.constant 0 : index
    %18 = vector.load %arg5[%c0_16, %c0_17] : memref<48x4xf32, #tpu.memory_space<vmem>>, vector<48x4xf32>
    %19 = vector.broadcast %16 : vector<48x1xf32> to vector<48x4xf32>
    %20 = arith.mulf %19, %18 : vector<48x4xf32>
    %cst_18 = arith.constant dense<0.000000e+00> : vector<12x4xf32>
    %21 = tpu.matmul %17, %20, %cst_18 {dimension_numbers = #tpu.dot_dimension_numbers<[1], [0], [0], [1], [0, 0, 1, 1], [], []>} : vector<12x48xf32>, vector<48x4xf32>, vector<12x4xf32> -> vector<12x4xf32>
    %cst_19 = arith.constant dense<0.000000e+00> : vector<4x4xf32>
    %22 = tpu.matmul %21, %21, %cst_19 {dimension_numbers = #tpu.dot_dimension_numbers<[0], [0], [1], [1], [0, 1, 1, 1], [], []>} : vector<12x4xf32>, vector<12x4xf32>, vector<4x4xf32> -> vector<4x4xf32>
    %c0_20 = arith.constant 0 : index
    %c0_21 = arith.constant 0 : index
    %c0_22 = arith.constant 0 : index
    %23 = vector.load %arg6[%c0_20, %c0_21, %c0_22] : memref<2x12x12xf32, #tpu.memory_space<vmem>>, vector<1x12x12xf32>
    %24 = vector.shape_cast %23 : vector<1x12x12xf32> to vector<12x12xf32>
    %cst_23 = arith.constant dense<0.000000e+00> : vector<12x4xf32>
    %25 = tpu.matmul %24, %21, %cst_23 {dimension_numbers = #tpu.dot_dimension_numbers<[1], [0], [0], [1], [0, 0, 1, 1], [], []>} : vector<12x12xf32>, vector<12x4xf32>, vector<12x4xf32> -> vector<12x4xf32>
    %c0_24 = arith.constant 0 : index
    %c0_25 = arith.constant 0 : index
    %c0_26 = arith.constant 0 : index
    %26 = vector.load %arg7[%c0_24, %c0_25, %c0_26] : memref<2x12x1xf32, #tpu.memory_space<vmem>>, vector<1x12x1xf32>
    %27 = vector.shape_cast %26 : vector<1x12x1xf32> to vector<12x1xf32>
    %28 = vector.broadcast %27 : vector<12x1xf32> to vector<12x4xf32>
    %29 = arith.addf %25, %28 : vector<12x4xf32>
    %cst_27 = arith.constant dense<0.000000e+00> : vector<12x4xf32>
    %30 = tpu.matmul %29, %22, %cst_27 {dimension_numbers = #tpu.dot_dimension_numbers<[1], [0], [0], [1], [0, 0, 1, 1], [], []>} : vector<12x4xf32>, vector<4x4xf32>, vector<12x4xf32> -> vector<12x4xf32>
    %cst_28 = arith.constant dense<0.000000e+00> : vector<4x4xf32>
    %31 = tpu.matmul %30, %30, %cst_28 {dimension_numbers = #tpu.dot_dimension_numbers<[0], [0], [1], [1], [0, 1, 1, 1], [], []>} : vector<12x4xf32>, vector<12x4xf32>, vector<4x4xf32> -> vector<4x4xf32>
    %c1 = arith.constant 1 : index
    %c0_29 = arith.constant 0 : index
    %c0_30 = arith.constant 0 : index
    %32 = vector.load %arg6[%c1, %c0_29, %c0_30] : memref<2x12x12xf32, #tpu.memory_space<vmem>>, vector<1x12x12xf32>
    %33 = vector.shape_cast %32 : vector<1x12x12xf32> to vector<12x12xf32>
    %cst_31 = arith.constant dense<0.000000e+00> : vector<12x4xf32>
    %34 = tpu.matmul %33, %30, %cst_31 {dimension_numbers = #tpu.dot_dimension_numbers<[1], [0], [0], [1], [0, 0, 1, 1], [], []>} : vector<12x12xf32>, vector<12x4xf32>, vector<12x4xf32> -> vector<12x4xf32>
    %c1_32 = arith.constant 1 : index
    %c0_33 = arith.constant 0 : index
    %c0_34 = arith.constant 0 : index
    %35 = vector.load %arg7[%c1_32, %c0_33, %c0_34] : memref<2x12x1xf32, #tpu.memory_space<vmem>>, vector<1x12x1xf32>
    %36 = vector.shape_cast %35 : vector<1x12x1xf32> to vector<12x1xf32>
    %37 = vector.broadcast %36 : vector<12x1xf32> to vector<12x4xf32>
    %38 = arith.addf %34, %37 : vector<12x4xf32>
    %cst_35 = arith.constant dense<0.000000e+00> : vector<12x4xf32>
    %39 = tpu.matmul %38, %31, %cst_35 {dimension_numbers = #tpu.dot_dimension_numbers<[1], [0], [0], [1], [0, 0, 1, 1], [], []>} : vector<12x4xf32>, vector<4x4xf32>, vector<12x4xf32> -> vector<12x4xf32>
    %cst_36 = arith.constant 0.000000e+00 : f32
    %40 = vector.broadcast %cst_36 : f32 to vector<12x4xf32>
    %41 = arith.maximumf %39, %40 : vector<12x4xf32>
    %c0_37 = arith.constant 0 : index
    %c0_38 = arith.constant 0 : index
    %42 = vector.load %arg8[%c0_37, %c0_38] : memref<192x12xf32, #tpu.memory_space<vmem>>, vector<192x12xf32>
    %cst_39 = arith.constant dense<0.000000e+00> : vector<192x4xf32>
    %43 = tpu.matmul %42, %41, %cst_39 {dimension_numbers = #tpu.dot_dimension_numbers<[1], [0], [0], [1], [0, 0, 1, 1], [], []>} : vector<192x12xf32>, vector<12x4xf32>, vector<192x4xf32> -> vector<192x4xf32>
    %c0_40 = arith.constant 0 : index
    %c0_41 = arith.constant 0 : index
    %44 = vector.load %arg9[%c0_40, %c0_41] : memref<192x4xf32, #tpu.memory_space<vmem>>, vector<192x4xf32>
    %45 = arith.mulf %43, %44 : vector<192x4xf32>
    %cst_42 = arith.constant dense<0.000000e+00> : vector<192xf32>
    %46 = vector.multi_reduction <add>, %45, %cst_42 [1] : vector<192x4xf32> to vector<192xf32>
    %47 = vector.shape_cast %46 : vector<192xf32> to vector<192x1xf32>
    %c0_43 = arith.constant 0 : index
    %c0_44 = arith.constant 0 : index
    %48 = vector.load %arg10[%c0_43, %c0_44] : memref<48x1xf32, #tpu.memory_space<vmem>>, vector<48x1xf32>
    %49 = vector.extract_strided_slice %47 {offsets = [0, 0], sizes = [48, 1], strides = [1, 1]} : vector<192x1xf32> to vector<48x1xf32>
    %50 = arith.addf %48, %49 : vector<48x1xf32>
    %51 = vector.extract_strided_slice %47 {offsets = [48, 0], sizes = [48, 1], strides = [1, 1]} : vector<192x1xf32> to vector<48x1xf32>
    %52 = arith.addf %50, %51 : vector<48x1xf32>
    %53 = vector.extract_strided_slice %47 {offsets = [96, 0], sizes = [48, 1], strides = [1, 1]} : vector<192x1xf32> to vector<48x1xf32>
    %54 = arith.addf %52, %53 : vector<48x1xf32>
    %55 = vector.extract_strided_slice %47 {offsets = [144, 0], sizes = [48, 1], strides = [1, 1]} : vector<192x1xf32> to vector<48x1xf32>
    %56 = arith.addf %54, %55 : vector<48x1xf32>
    %57 = arith.negf %56 : vector<48x1xf32>
    %58 = math.exp %57 : vector<48x1xf32>
    %cst_45 = arith.constant 1.000000e+00 : f32
    %59 = vector.broadcast %cst_45 : f32 to vector<48x1xf32>
    %60 = arith.addf %59, %58 : vector<48x1xf32>
    %61 = arith.divf %59, %60 : vector<48x1xf32>
    %62 = vector.extract_strided_slice %61 {offsets = [0, 0], sizes = [16, 1], strides = [1, 1]} : vector<48x1xf32> to vector<16x1xf32>
    %c0_46 = arith.constant 0 : index
    %c0_47 = arith.constant 0 : index
    %c0_48 = arith.constant 0 : index
    %63 = vector.load %arg1[%c0_46, %c0_47, %c0_48] : memref<1x16x256xf32, #tpu.memory_space<vmem>>, vector<1x16x256xf32>
    %64 = vector.shape_cast %63 : vector<1x16x256xf32> to vector<16x256xf32>
    %65 = vector.broadcast %62 : vector<16x1xf32> to vector<16x256xf32>
    %66 = arith.mulf %65, %64 : vector<16x256xf32>
    %c0_49 = arith.constant 0 : index
    %c0_50 = arith.constant 0 : index
    %c0_51 = arith.constant 0 : index
    %67 = vector.load %arg11[%c0_49, %c0_50, %c0_51] : memref<1x16x256xf32, #tpu.memory_space<vmem>>, vector<1x16x256xf32>
    %68 = vector.shape_cast %67 : vector<1x16x256xf32> to vector<16x256xf32>
    %69 = vector.shape_cast %66 : vector<16x256xf32> to vector<1x16x256xf32>
    tpu.vector_store %arg11[%c0_49, %c0_50, %c0_51], %69 {strides = array<i32>} : memref<1x16x256xf32, #tpu.memory_space<vmem>>, vector<1x16x256xf32>,
    %70 = vector.extract_strided_slice %61 {offsets = [16, 0], sizes = [16, 1], strides = [1, 1]} : vector<48x1xf32> to vector<16x1xf32>
    %c0_52 = arith.constant 0 : index
    %c0_53 = arith.constant 0 : index
    %c0_54 = arith.constant 0 : index
    %71 = vector.load %arg2[%c0_52, %c0_53, %c0_54] : memref<1x16x256xf32, #tpu.memory_space<vmem>>, vector<1x16x256xf32>
    %72 = vector.shape_cast %71 : vector<1x16x256xf32> to vector<16x256xf32>
    %73 = vector.broadcast %70 : vector<16x1xf32> to vector<16x256xf32>
    %74 = arith.mulf %73, %72 : vector<16x256xf32>
    %c0_55 = arith.constant 0 : index
    %c0_56 = arith.constant 0 : index
    %c0_57 = arith.constant 0 : index
    %75 = vector.load %arg12[%c0_55, %c0_56, %c0_57] : memref<1x16x256xf32, #tpu.memory_space<vmem>>, vector<1x16x256xf32>
    %76 = vector.shape_cast %75 : vector<1x16x256xf32> to vector<16x256xf32>
    %77 = vector.shape_cast %74 : vector<16x256xf32> to vector<1x16x256xf32>
    tpu.vector_store %arg12[%c0_55, %c0_56, %c0_57], %77 {strides = array<i32>} : memref<1x16x256xf32, #tpu.memory_space<vmem>>, vector<1x16x256xf32>,
    %78 = vector.extract_strided_slice %61 {offsets = [32, 0], sizes = [16, 1], strides = [1, 1]} : vector<48x1xf32> to vector<16x1xf32>
    %c0_58 = arith.constant 0 : index
    %c0_59 = arith.constant 0 : index
    %c0_60 = arith.constant 0 : index
    %79 = vector.load %arg3[%c0_58, %c0_59, %c0_60] : memref<1x16x256xf32, #tpu.memory_space<vmem>>, vector<1x16x256xf32>
    %80 = vector.shape_cast %79 : vector<1x16x256xf32> to vector<16x256xf32>
    %81 = vector.broadcast %78 : vector<16x1xf32> to vector<16x256xf32>
    %82 = arith.mulf %81, %80 : vector<16x256xf32>
    %c0_61 = arith.constant 0 : index
    %c0_62 = arith.constant 0 : index
    %c0_63 = arith.constant 0 : index
    %83 = vector.load %arg13[%c0_61, %c0_62, %c0_63] : memref<1x16x256xf32, #tpu.memory_space<vmem>>, vector<1x16x256xf32>
    %84 = vector.shape_cast %83 : vector<1x16x256xf32> to vector<16x256xf32>
    %85 = vector.shape_cast %82 : vector<16x256xf32> to vector<1x16x256xf32>
    tpu.vector_store %arg13[%c0_61, %c0_62, %c0_63], %85 {strides = array<i32>} : memref<1x16x256xf32, #tpu.memory_space<vmem>>, vector<1x16x256xf32>,
    return
  }
  func.func @transform_0(%arg0: i32) -> (i32, i32, i32) {
    %c0_i32 = arith.constant 0 : i32
    %c0_i32_0 = arith.constant 0 : i32
    %c0_i32_1 = arith.constant 0 : i32
    return %arg0, %c0_i32, %c0_i32_0 : i32, i32, i32
  }
  func.func @transform_1(%arg0: i32) -> (i32, i32, i32) {
    %c0_i32 = arith.constant 0 : i32
    %c0_i32_0 = arith.constant 0 : i32
    %c0_i32_1 = arith.constant 0 : i32
    return %arg0, %c0_i32, %c0_i32_0 : i32, i32, i32
  }
  func.func @transform_2(%arg0: i32) -> (i32, i32, i32) {
    %c0_i32 = arith.constant 0 : i32
    %c0_i32_0 = arith.constant 0 : i32
    %c0_i32_1 = arith.constant 0 : i32
    return %arg0, %c0_i32, %c0_i32_0 : i32, i32, i32
  }
  func.func @transform_3(%arg0: i32) -> (i32, i32) {
    %c0_i32 = arith.constant 0 : i32
    %c0_i32_0 = arith.constant 0 : i32
    %c0_i32_1 = arith.constant 0 : i32
    return %c0_i32, %c0_i32_0 : i32, i32
  }
  func.func @transform_4(%arg0: i32) -> (i32, i32) {
    %c0_i32 = arith.constant 0 : i32
    %c0_i32_0 = arith.constant 0 : i32
    %c0_i32_1 = arith.constant 0 : i32
    return %c0_i32, %c0_i32_0 : i32, i32
  }
  func.func @transform_5(%arg0: i32) -> (i32, i32, i32) {
    %c0_i32 = arith.constant 0 : i32
    %c0_i32_0 = arith.constant 0 : i32
    %c0_i32_1 = arith.constant 0 : i32
    %c0_i32_2 = arith.constant 0 : i32
    return %c0_i32, %c0_i32_0, %c0_i32_1 : i32, i32, i32
  }
  func.func @transform_6(%arg0: i32) -> (i32, i32, i32) {
    %c0_i32 = arith.constant 0 : i32
    %c0_i32_0 = arith.constant 0 : i32
    %c0_i32_1 = arith.constant 0 : i32
    %c0_i32_2 = arith.constant 0 : i32
    return %c0_i32, %c0_i32_0, %c0_i32_1 : i32, i32, i32
  }
  func.func @transform_7(%arg0: i32) -> (i32, i32) {
    %c0_i32 = arith.constant 0 : i32
    %c0_i32_0 = arith.constant 0 : i32
    %c0_i32_1 = arith.constant 0 : i32
    return %c0_i32, %c0_i32_0 : i32, i32
  }
  func.func @transform_8(%arg0: i32) -> (i32, i32) {
    %c0_i32 = arith.constant 0 : i32
    %c0_i32_0 = arith.constant 0 : i32
    %c0_i32_1 = arith.constant 0 : i32
    return %c0_i32, %c0_i32_0 : i32, i32
  }
  func.func @transform_9(%arg0: i32) -> (i32, i32) {
    %c0_i32 = arith.constant 0 : i32
    %c0_i32_0 = arith.constant 0 : i32
    %c0_i32_1 = arith.constant 0 : i32
    return %c0_i32, %c0_i32_0 : i32, i32
  }
  func.func @transform_10(%arg0: i32) -> (i32, i32, i32) {
    %c0_i32 = arith.constant 0 : i32
    %c0_i32_0 = arith.constant 0 : i32
    %c0_i32_1 = arith.constant 0 : i32
    return %arg0, %c0_i32, %c0_i32_0 : i32, i32, i32
  }
  func.func @transform_11(%arg0: i32) -> (i32, i32, i32) {
    %c0_i32 = arith.constant 0 : i32
    %c0_i32_0 = arith.constant 0 : i32
    %c0_i32_1 = arith.constant 0 : i32
    return %arg0, %c0_i32, %c0_i32_0 : i32, i32, i32
  }
  func.func @transform_12(%arg0: i32) -> (i32, i32, i32) {
    %c0_i32 = arith.constant 0 : i32
    %c0_i32_0 = arith.constant 0 : i32
    %c0_i32_1 = arith.constant 0 : i32
    return %arg0, %c0_i32, %c0_i32_0 : i32, i32, i32
  }
}

</mosaic_0001>

<llo_original>
// kernel: tpu_custom_call.1
$region0: #{tpu_custom_call.1}
  #allocation0 [shape = 'u32[]', space=smem, size = 0x4, offset = 0x4, fixed_abs, tag = 'smem constant byte address 0x4 - core index']
  #allocation1 [shape = 'u32[144,128]{1,0:T(1,128)}', space=vmem, size = 0x12000, scoped, tag = 'internal scratch']
  %s0 = inlined_call_operand.vmem [shape: f32[2,16,256], index: 0, kind: input, shape index: {}]
  %s1 = inlined_call_operand.vmem [shape: f32[2,16,256], index: 1, kind: input, shape index: {}]
  %s2 = inlined_call_operand.vmem [shape: f32[2,16,256], index: 2, kind: input, shape index: {}]
  %s3 = inlined_call_operand.vmem [shape: f32[12,48], index: 3, kind: input, shape index: {}]
  %s4 = inlined_call_operand.vmem [shape: f32[48,4], index: 4, kind: input, shape index: {}]
  %s5 = inlined_call_operand.vmem [shape: f32[2,12,12], index: 5, kind: input, shape index: {}]
  %s6 = inlined_call_operand.vmem [shape: f32[2,12,1], index: 6, kind: input, shape index: {}]
  %s7 = inlined_call_operand.vmem [shape: f32[192,12], index: 7, kind: input, shape index: {}]
  %s8 = inlined_call_operand.vmem [shape: f32[192,4], index: 8, kind: input, shape index: {}]
  %s9 = inlined_call_operand.vmem [shape: f32[48,1], index: 9, kind: input, shape index: {}]
  %s10 = inlined_call_operand.hbm [shape: f32[2,16,256], index: 10, kind: output, shape index: {0}]
  %s11 = inlined_call_operand.hbm [shape: f32[2,16,256], index: 11, kind: output, shape index: {1}]
  %s12 = inlined_call_operand.hbm [shape: f32[2,16,256], index: 12, kind: output, shape index: {2}]
  %13 = xla_tuple %s10, %s11, %s12
  %s14 = sld [smem:[#allocation0]]
  $region89: #{tpu_custom_call.1} parent=0
    _
  %s16 = ssub.s32 1, %s14
  %s17 = scalar_select 0, %s16, %s14
  $region1: #{tpu_custom_call.1} parent=0
    #allocation2 [shape = 'u8[32768]{0}', space=vmem, size = 0x8000, scoped, tag = 'output window, operand 0']
    #allocation3 [shape = 's32[2]{0}', space=sflag, size = 0x8, scoped, tag = 'scoped memory for tpu_custom_call.1']
    #allocation4 [shape = 'u8[32768]{0}', space=vmem, size = 0x8000, scoped, tag = 'output window, operand 1']
    #allocation5 [shape = 's32[2]{0}', space=sflag, size = 0x8, scoped, tag = 'scoped memory for tpu_custom_call.1']
    #allocation6 [shape = 'u8[32768]{0}', space=vmem, size = 0x8000, scoped, tag = 'output window, operand 2']
    %18 = vsyncpa [#allocation3], 0
    %s19 = scalar_lea.sflag [#allocation3], 1
    %20 = vsyncpa %s19, 0
    %21 = vsyncpa [#allocation5], 0
    %s22 = scalar_lea.sflag [#allocation5], 1
    %23 = vsyncpa %s22, 0
    loop: start=0, step=1, limit=4
    $region2: #{tpu_custom_call.1} parent=1 // loop_pre_header
      _
    $region3: #{tpu_custom_call.1} parent=1 // loop_header
      %s25 = sphi 0, %s29
      %p26 = scmp.ge.s32.totalorder %s25, 4
      %s35 = sphi 0, %s37
      %s38 = sphi 0, %s35
      %s39 = sphi 0, %s38
      %s55 = sphi 0, %s39
      %s61 = sphi 0, %s63
      %s64 = sphi 0, %s61
      %s65 = sphi 0, %s64
      %s81 = sphi 0, %s65
      %s87 = sphi 0, %s89
      %s90 = sphi 0, %s87
      %s91 = sphi 0, %s90
      %s107 = sphi 0, %s91
      %s111 = sphi 0, %s111
      %s113 = sphi 0, %s111
      %s114 = sphi 0, %s113
      %s128 = sphi 0, %s114
      %s132 = sphi 0, %s132
      %s134 = sphi 0, %s132
      %s135 = sphi 0, %s134
      %s149 = sphi 0, %s135
      %s153 = sphi 0, %s153
      %s155 = sphi 0, %s153
      %s156 = sphi 0, %s155
      %s170 = sphi 0, %s156
      %s174 = sphi 0, %s174
      %s176 = sphi 0, %s174
      %s177 = sphi 0, %s176
      %s191 = sphi 0, %s177
      %s195 = sphi 0, %s195
      %s197 = sphi 0, %s195
      %s198 = sphi 0, %s197
      %s212 = sphi 0, %s198
      %s216 = sphi 0, %s216
      %s218 = sphi 0, %s216
      %s219 = sphi 0, %s218
      %s233 = sphi 0, %s219
      %s237 = sphi 0, %s237
      %s239 = sphi 0, %s237
      %s240 = sphi 0, %s239
      %s254 = sphi 0, %s240
      %s260 = sphi 0, %s262
      %s263 = sphi 0, %s260
      %s264 = sphi 0, %s263
      %s280 = sphi 0, %s264
      %s286 = sphi 0, %s288
      %s289 = sphi 0, %s286
      %s290 = sphi 0, %s289
      %s306 = sphi 0, %s290
      %s312 = sphi 0, %s314
      %s315 = sphi 0, %s312
      %s316 = sphi 0, %s315
      %s332 = sphi 0, %s316
    $region4: #{tpu_custom_call.1} parent=1 // loop_header_branch
      %28 = sbr.rel (%p26) target = $region8
    $region5: #{tpu_custom_call.1} parent=1 // loop_body
      %s30 = ssub.s32 %s25, 1
      %s31 = ssub.s32 %s25, 2
      %s32 = sadd.s32 %s25, 1
      %s33 = ssub.s32 %s25, %s32
      %p34 = scmp.eq.s32.totalorder %s33, 0
      %s36 = sadd.s32 %s35, 1
      %s37 = scalar_select %p34, %s35, %s36
      %p40 = pneg %p34
      %p41 = scmp.eq.s32.totalorder %s25, 1
      %p42 = por %p40, %p41
      %p43 = scmp.ne.s32.totalorder %s35, %s38
      %p44 = scmp.eq.s32.totalorder %s25, 0
      %p45 = por %p43, %p44
      %p46 = scmp.ne.s32.totalorder %s35, %s38
      %p47 = scmp.eq.s32.totalorder %s30, 1
      %p48 = por %p46, %p47
      %p49 = scmp.ne.s32.totalorder %s38, %s39
      %p50 = scmp.eq.s32.totalorder %s30, 0
      %p51 = por %p49, %p50
      %p52 = scmp.ne.s32.totalorder %s38, %s39
      %p53 = scmp.eq.s32.totalorder %s31, 1
      %p54 = por %p52, %p53
      %p56 = scmp.ne.s32.totalorder %s39, %s55
      %p57 = scmp.eq.s32.totalorder %s31, 0
      %p58 = por %p56, %p57
      %s59 = ssub.s32 %s25, %s32
      %p60 = scmp.eq.s32.totalorder %s59, 0
      %s62 = sadd.s32 %s61, 1
      %s63 = scalar_select %p60, %s61, %s62
      %p66 = pneg %p60
      %p67 = scmp.eq.s32.totalorder %s25, 1
      %p68 = por %p66, %p67
      %p69 = scmp.ne.s32.totalorder %s61, %s64
      %p70 = scmp.eq.s32.totalorder %s25, 0
      %p71 = por %p69, %p70
      %p72 = scmp.ne.s32.totalorder %s61, %s64
      %p73 = scmp.eq.s32.totalorder %s30, 1
      %p74 = por %p72, %p73
      %p75 = scmp.ne.s32.totalorder %s64, %s65
      %p76 = scmp.eq.s32.totalorder %s30, 0
      %p77 = por %p75, %p76
      %p78 = scmp.ne.s32.totalorder %s64, %s65
      %p79 = scmp.eq.s32.totalorder %s31, 1
      %p80 = por %p78, %p79
      %p82 = scmp.ne.s32.totalorder %s65, %s81
      %p83 = scmp.eq.s32.totalorder %s31, 0
      %p84 = por %p82, %p83
      %s85 = ssub.s32 %s25, %s32
      %p86 = scmp.eq.s32.totalorder %s85, 0
      %s88 = sadd.s32 %s87, 1
      %s89 = scalar_select %p86, %s87, %s88
      %p92 = pneg %p86
      %p93 = scmp.eq.s32.totalorder %s25, 1
      %p94 = por %p92, %p93
      %p95 = scmp.ne.s32.totalorder %s87, %s90
      %p96 = scmp.eq.s32.totalorder %s25, 0
      %p97 = por %p95, %p96
      %p98 = scmp.ne.s32.totalorder %s87, %s90
      %p99 = scmp.eq.s32.totalorder %s30, 1
      %p100 = por %p98, %p99
      %p101 = scmp.ne.s32.totalorder %s90, %s91
      %p102 = scmp.eq.s32.totalorder %s30, 0
      %p103 = por %p101, %p102
      %p104 = scmp.ne.s32.totalorder %s90, %s91
      %p105 = scmp.eq.s32.totalorder %s31, 1
      %p106 = por %p104, %p105
      %p108 = scmp.ne.s32.totalorder %s91, %s107
      %p109 = scmp.eq.s32.totalorder %s31, 0
      %p110 = por %p108, %p109
      %s112 = sadd.s32 %s111, 1
      %p115 = scmp.eq.s32.totalorder %s25, 1
      %p116 = scmp.ne.s32.totalorder %s111, %s113
      %p117 = scmp.eq.s32.totalorder %s25, 0
      %p118 = por %p116, %p117
      %p119 = scmp.ne.s32.totalorder %s111, %s113
      %p120 = scmp.eq.s32.totalorder %s30, 1
      %p121 = por %p119, %p120
      %p122 = scmp.ne.s32.totalorder %s113, %s114
      %p123 = scmp.eq.s32.totalorder %s30, 0
      %p124 = por %p122, %p123
      %p125 = scmp.ne.s32.totalorder %s113, %s114
      %p126 = scmp.eq.s32.totalorder %s31, 1
      %p127 = por %p125, %p126
      %p129 = scmp.ne.s32.totalorder %s114, %s128
      %p130 = scmp.eq.s32.totalorder %s31, 0
      %p131 = por %p129, %p130
      %s133 = sadd.s32 %s132, 1
      %p136 = scmp.eq.s32.totalorder %s25, 1
      %p137 = scmp.ne.s32.totalorder %s132, %s134
      %p138 = scmp.eq.s32.totalorder %s25, 0
      %p139 = por %p137, %p138
      %p140 = scmp.ne.s32.totalorder %s132, %s134
      %p141 = scmp.eq.s32.totalorder %s30, 1
      %p142 = por %p140, %p141
      %p143 = scmp.ne.s32.totalorder %s134, %s135
      %p144 = scmp.eq.s32.totalorder %s30, 0
      %p145 = por %p143, %p144
      %p146 = scmp.ne.s32.totalorder %s134, %s135
      %p147 = scmp.eq.s32.totalorder %s31, 1
      %p148 = por %p146, %p147
      %p150 = scmp.ne.s32.totalorder %s135, %s149
      %p151 = scmp.eq.s32.totalorder %s31, 0
      %p152 = por %p150, %p151
      %s154 = sadd.s32 %s153, 1
      %p157 = scmp.eq.s32.totalorder %s25, 1
      %p158 = scmp.ne.s32.totalorder %s153, %s155
      %p159 = scmp.eq.s32.totalorder %s25, 0
      %p160 = por %p158, %p159
      %p161 = scmp.ne.s32.totalorder %s153, %s155
      %p162 = scmp.eq.s32.totalorder %s30, 1
      %p163 = por %p161, %p162
      %p164 = scmp.ne.s32.totalorder %s155, %s156
      %p165 = scmp.eq.s32.totalorder %s30, 0
      %p166 = por %p164, %p165
      %p167 = scmp.ne.s32.totalorder %s155, %s156
      %p168 = scmp.eq.s32.totalorder %s31, 1
      %p169 = por %p167, %p168
      %p171 = scmp.ne.s32.totalorder %s156, %s170
      %p172 = scmp.eq.s32.totalorder %s31, 0
      %p173 = por %p171, %p172
      %s175 = sadd.s32 %s174, 1
      %p178 = scmp.eq.s32.totalorder %s25, 1
      %p179 = scmp.ne.s32.totalorder %s174, %s176
      %p180 = scmp.eq.s32.totalorder %s25, 0
      %p181 = por %p179, %p180
      %p182 = scmp.ne.s32.totalorder %s174, %s176
      %p183 = scmp.eq.s32.totalorder %s30, 1
      %p184 = por %p182, %p183
      %p185 = scmp.ne.s32.totalorder %s176, %s177
      %p186 = scmp.eq.s32.totalorder %s30, 0
      %p187 = por %p185, %p186
      %p188 = scmp.ne.s32.totalorder %s176, %s177
      %p189 = scmp.eq.s32.totalorder %s31, 1
      %p190 = por %p188, %p189
      %p192 = scmp.ne.s32.totalorder %s177, %s191
      %p193 = scmp.eq.s32.totalorder %s31, 0
      %p194 = por %p192, %p193
      %s196 = sadd.s32 %s195, 1
      %p199 = scmp.eq.s32.totalorder %s25, 1
      %p200 = scmp.ne.s32.totalorder %s195, %s197
      %p201 = scmp.eq.s32.totalorder %s25, 0
      %p202 = por %p200, %p201
      %p203 = scmp.ne.s32.totalorder %s195, %s197
      %p204 = scmp.eq.s32.totalorder %s30, 1
      %p205 = por %p203, %p204
      %p206 = scmp.ne.s32.totalorder %s197, %s198
      %p207 = scmp.eq.s32.totalorder %s30, 0
      %p208 = por %p206, %p207
      %p209 = scmp.ne.s32.totalorder %s197, %s198
      %p210 = scmp.eq.s32.totalorder %s31, 1
      %p211 = por %p209, %p210
      %p213 = scmp.ne.s32.totalorder %s198, %s212
      %p214 = scmp.eq.s32.totalorder %s31, 0
      %p215 = por %p213, %p214
      %s217 = sadd.s32 %s216, 1
      %p220 = scmp.eq.s32.totalorder %s25, 1
      %p221 = scmp.ne.s32.totalorder %s216, %s218
      %p222 = scmp.eq.s32.totalorder %s25, 0
      %p223 = por %p221, %p222
      %p224 = scmp.ne.s32.totalorder %s216, %s218
      %p225 = scmp.eq.s32.totalorder %s30, 1
      %p226 = por %p224, %p225
      %p227 = scmp.ne.s32.totalorder %s218, %s219
      %p228 = scmp.eq.s32.totalorder %s30, 0
      %p229 = por %p227, %p228
      %p230 = scmp.ne.s32.totalorder %s218, %s219
      %p231 = scmp.eq.s32.totalorder %s31, 1
      %p232 = por %p230, %p231
      %p234 = scmp.ne.s32.totalorder %s219, %s233
      %p235 = scmp.eq.s32.totalorder %s31, 0
      %p236 = por %p234, %p235
      %s238 = sadd.s32 %s237, 1
      %p241 = scmp.eq.s32.totalorder %s25, 1
      %p242 = scmp.ne.s32.totalorder %s237, %s239
      %p243 = scmp.eq.s32.totalorder %s25, 0
      %p244 = por %p242, %p243
      %p245 = scmp.ne.s32.totalorder %s237, %s239
      %p246 = scmp.eq.s32.totalorder %s30, 1
      %p247 = por %p245, %p246
      %p248 = scmp.ne.s32.totalorder %s239, %s240
      %p249 = scmp.eq.s32.totalorder %s30, 0
      %p250 = por %p248, %p249
      %p251 = scmp.ne.s32.totalorder %s239, %s240
      %p252 = scmp.eq.s32.totalorder %s31, 1
      %p253 = por %p251, %p252
      %p255 = scmp.ne.s32.totalorder %s240, %s254
      %p256 = scmp.eq.s32.totalorder %s31, 0
      %p257 = por %p255, %p256
      %s258 = ssub.s32 %s25, %s32
      %p259 = scmp.eq.s32.totalorder %s258, 0
      %s261 = sadd.s32 %s260, 1
      %s262 = scalar_select %p259, %s260, %s261
      %p265 = pneg %p259
      %p266 = scmp.eq.s32.totalorder %s25, 1
      %p267 = por %p265, %p266
      %p268 = scmp.ne.s32.totalorder %s260, %s263
      %p269 = scmp.eq.s32.totalorder %s25, 0
      %p270 = por %p268, %p269
      %p271 = scmp.ne.s32.totalorder %s260, %s263
      %p272 = scmp.eq.s32.totalorder %s30, 1
      %p273 = por %p271, %p272
      %p274 = scmp.ne.s32.totalorder %s263, %s264
      %p275 = scmp.eq.s32.totalorder %s30, 0
      %p276 = por %p274, %p275
      %p277 = scmp.ne.s32.totalorder %s263, %s264
      %p278 = scmp.eq.s32.totalorder %s31, 1
      %p279 = por %p277, %p278
      %p281 = scmp.ne.s32.totalorder %s264, %s280
      %p282 = scmp.eq.s32.totalorder %s31, 0
      %p283 = por %p281, %p282
      %s284 = ssub.s32 %s25, %s32
      %p285 = scmp.eq.s32.totalorder %s284, 0
      %s287 = sadd.s32 %s286, 1
      %s288 = scalar_select %p285, %s286, %s287
      %p291 = pneg %p285
      %p292 = scmp.eq.s32.totalorder %s25, 1
      %p293 = por %p291, %p292
      %p294 = scmp.ne.s32.totalorder %s286, %s289
      %p295 = scmp.eq.s32.totalorder %s25, 0
      %p296 = por %p294, %p295
      %p297 = scmp.ne.s32.totalorder %s286, %s289
      %p298 = scmp.eq.s32.totalorder %s30, 1
      %p299 = por %p297, %p298
      %p300 = scmp.ne.s32.totalorder %s289, %s290
      %p301 = scmp.eq.s32.totalorder %s30, 0
      %p302 = por %p300, %p301
      %p303 = scmp.ne.s32.totalorder %s289, %s290
      %p304 = scmp.eq.s32.totalorder %s31, 1
      %p305 = por %p303, %p304
      %p307 = scmp.ne.s32.totalorder %s290, %s306
      %p308 = scmp.eq.s32.totalorder %s31, 0
      %p309 = por %p307, %p308
      %s310 = ssub.s32 %s25, %s32
      %p311 = scmp.eq.s32.totalorder %s310, 0
      %s313 = sadd.s32 %s312, 1
      %s314 = scalar_select %p311, %s312, %s313
      %p317 = pneg %p311
      %p318 = scmp.eq.s32.totalorder %s25, 1
      %p319 = por %p317, %p318
      %p320 = scmp.ne.s32.totalorder %s312, %s315
      %p321 = scmp.eq.s32.totalorder %s25, 0
      %p322 = por %p320, %p321
      %p323 = scmp.ne.s32.totalorder %s312, %s315
      %p324 = scmp.eq.s32.totalorder %s30, 1
      %p325 = por %p323, %p324
      %p326 = scmp.ne.s32.totalorder %s315, %s316
      %p327 = scmp.eq.s32.totalorder %s30, 0
      %p328 = por %p326, %p327
      %p329 = scmp.ne.s32.totalorder %s315, %s316
      %p330 = scmp.eq.s32.totalorder %s31, 1
      %p331 = por %p329, %p330
      %p333 = scmp.ne.s32.totalorder %s316, %s332
      %p334 = scmp.eq.s32.totalorder %s31, 0
      %p335 = por %p333, %p334
      %p336 = scmp.le.s32.totalorder 1, %s25
      %p337 = scmp.lt.s32.totalorder %s25, 3
      %p338 = pnand %p336, %p337
      %p339 = pneg %p338
      // Predicated region
      $region9: #{tpu_custom_call.1} parent=5 // pred_check
        _
      $region10: #{tpu_custom_call.1} parent=5 // pred_check_branch
        %341 = sbr.rel (%p338) target = $region12
      $region11: #{tpu_custom_call.1} parent=5 // pred_region
        %s342 = ssub.s32 %s25, 1
        // Predicated region
        $region13: #{tpu_custom_call.1} parent=11 // pred_check
          %p343 = pneg %p124
        $region14: #{tpu_custom_call.1} parent=11 // pred_check_branch
          %345 = sbr.rel (%p343) target = $region16
        $region15: #{tpu_custom_call.1} parent=11 // pred_region
          _
        $region16: #{tpu_custom_call.1} parent=11 // pred_fallthru
          _
        // Predicated region
        $region17: #{tpu_custom_call.1} parent=11 // pred_check
          %p346 = pneg %p145
        $region18: #{tpu_custom_call.1} parent=11 // pred_check_branch
          %348 = sbr.rel (%p346) target = $region20
        $region19: #{tpu_custom_call.1} parent=11 // pred_region
          _
        $region20: #{tpu_custom_call.1} parent=11 // pred_fallthru
          _
        // Predicated region
        $region21: #{tpu_custom_call.1} parent=11 // pred_check
          %p349 = pneg %p166
        $region22: #{tpu_custom_call.1} parent=11 // pred_check_branch
          %351 = sbr.rel (%p349) target = $region24
        $region23: #{tpu_custom_call.1} parent=11 // pred_region
          _
        $region24: #{tpu_custom_call.1} parent=11 // pred_fallthru
          _
        // Predicated region
        $region25: #{tpu_custom_call.1} parent=11 // pred_check
          %p352 = pneg %p187
        $region26: #{tpu_custom_call.1} parent=11 // pred_check_branch
          %354 = sbr.rel (%p352) target = $region28
        $region27: #{tpu_custom_call.1} parent=11 // pred_region
          _
        $region28: #{tpu_custom_call.1} parent=11 // pred_fallthru
          _
        // Predicated region
        $region29: #{tpu_custom_call.1} parent=11 // pred_check
          %p355 = pneg %p208
        $region30: #{tpu_custom_call.1} parent=11 // pred_check_branch
          %357 = sbr.rel (%p355) target = $region32
        $region31: #{tpu_custom_call.1} parent=11 // pred_region
          _
        $region32: #{tpu_custom_call.1} parent=11 // pred_fallthru
          _
        // Predicated region
        $region33: #{tpu_custom_call.1} parent=11 // pred_check
          %p358 = pneg %p229
        $region34: #{tpu_custom_call.1} parent=11 // pred_check_branch
          %360 = sbr.rel (%p358) target = $region36
        $region35: #{tpu_custom_call.1} parent=11 // pred_region
          _
        $region36: #{tpu_custom_call.1} parent=11 // pred_fallthru
          _
        // Predicated region
        $region37: #{tpu_custom_call.1} parent=11 // pred_check
          %p361 = pneg %p250
        $region38: #{tpu_custom_call.1} parent=11 // pred_check_branch
          %363 = sbr.rel (%p361) target = $region40
        $region39: #{tpu_custom_call.1} parent=11 // pred_region
          _
        $region40: #{tpu_custom_call.1} parent=11 // pred_fallthru
          _
      $region12: #{tpu_custom_call.1} parent=5 // pred_fallthru
        _
      %p364 = scmp.lt.s32.totalorder %s25, 2
      // Predicated region
      $region41: #{tpu_custom_call.1} parent=5 // pred_check
        %p365 = pneg %p364
      $region42: #{tpu_custom_call.1} parent=5 // pred_check_branch
        %367 = sbr.rel (%p365) target = $region44
      $region43: #{tpu_custom_call.1} parent=5 // pred_region
        // Predicated region
        $region45: #{tpu_custom_call.1} parent=43 // pred_check
          %p368 = pneg %p45
        $region46: #{tpu_custom_call.1} parent=43 // pred_check_branch
          %370 = sbr.rel (%p368) target = $region48
        $region47: #{tpu_custom_call.1} parent=43 // pred_region
          %p371 = scmp.lt.s32.totalorder %s25, 1
          %s372 = scalar_select %p371, %s25, 1
          %s373 = smul.addr %s372, 4
          %s374 = smul.addr %s373, 8
          %s375 = scalar_lea.vmem %s0, %s374
        $region48: #{tpu_custom_call.1} parent=43 // pred_fallthru
          _
        // Predicated region
        $region49: #{tpu_custom_call.1} parent=43 // pred_check
          %p376 = pneg %p71
        $region50: #{tpu_custom_call.1} parent=43 // pred_check_branch
          %378 = sbr.rel (%p376) target = $region52
        $region51: #{tpu_custom_call.1} parent=43 // pred_region
          %p379 = scmp.lt.s32.totalorder %s25, 1
          %s380 = scalar_select %p379, %s25, 1
          %s381 = smul.addr %s380, 4
          %s382 = smul.addr %s381, 8
          %s383 = scalar_lea.vmem %s1, %s382
        $region52: #{tpu_custom_call.1} parent=43 // pred_fallthru
          _
        // Predicated region
        $region53: #{tpu_custom_call.1} parent=43 // pred_check
          %p384 = pneg %p97
        $region54: #{tpu_custom_call.1} parent=43 // pred_check_branch
          %386 = sbr.rel (%p384) target = $region56
        $region55: #{tpu_custom_call.1} parent=43 // pred_region
          %p387 = scmp.lt.s32.totalorder %s25, 1
          %s388 = scalar_select %p387, %s25, 1
          %s389 = smul.addr %s388, 4
          %s390 = smul.addr %s389, 8
          %s391 = scalar_lea.vmem %s2, %s390
        $region56: #{tpu_custom_call.1} parent=43 // pred_fallthru
          _
      $region44: #{tpu_custom_call.1} parent=5 // pred_fallthru
        _
      %p392 = scmp.le.s32.totalorder 1, %s25
      %p393 = scmp.lt.s32.totalorder %s25, 3
      %p394 = pnand %p392, %p393
      %p395 = pneg %p394
      // Predicated region
      $region57: #{tpu_custom_call.1} parent=5 // pred_check
        _
      $region58: #{tpu_custom_call.1} parent=5 // pred_check_branch
        %397 = sbr.rel (%p394) target = $region60
      $region59: #{tpu_custom_call.1} parent=5 // pred_region
        %s398 = ssub.s32 %s25, 1
        %p399 = scmp.lt.s32.totalorder %s30, 1
        %s400 = scalar_select %p399, %s30, 1
        %s401 = smul.addr %s400, 4
        %s402 = smul.addr %s401, 8
        %s403 = scalar_lea.vmem %s0, %s402
        %p404 = pneg %p51
        %p405 = pneg %p48
        %p406 = scmp.lt.s32.totalorder %s30, 1
        %s407 = scalar_select %p406, %s30, 1
        %s408 = smul.addr %s407, 4
        %s409 = smul.addr %s408, 8
        %s410 = scalar_lea.vmem %s1, %s409
        %p411 = pneg %p77
        %p412 = pneg %p74
        %p413 = scmp.lt.s32.totalorder %s30, 1
        %s414 = scalar_select %p413, %s30, 1
        %s415 = smul.addr %s414, 4
        %s416 = smul.addr %s415, 8
        %s417 = scalar_lea.vmem %s2, %s416
        %p418 = pneg %p103
        %p419 = pneg %p100
        %p420 = pneg %p124
        %p421 = pneg %p121
        %p422 = pneg %p145
        %p423 = pneg %p142
        %p424 = pneg %p166
        %p425 = pneg %p163
        %p426 = pneg %p187
        %p427 = pneg %p184
        %p428 = pneg %p208
        %p429 = pneg %p205
        %p430 = pneg %p229
        %p431 = pneg %p226
        %p432 = pneg %p250
        %p433 = pneg %p247
        %p434 = pneg %p276
        %p435 = pneg %p273
        %s436 = sand.u32 %s263, 1
        %s437 = scalar_lea.sflag [#allocation3], %s436
        %s438 = sand.u32 %s263, 1
        %s439 = smul.addr %s438, 32
        %s440 = scalar_lea.vmem [#allocation2], %s439
        %p441 = pneg %p302
        %p442 = pneg %p299
        %s443 = sand.u32 %s30, 1
        %s444 = scalar_lea.sflag [#allocation5], %s443
        %s445 = sand.u32 %s289, 1
        %s446 = smul.addr %s445, 32
        %s447 = scalar_lea.vmem [#allocation4], %s446
        %p448 = pneg %p328
        %p449 = pneg %p325
        %s450 = sand.u32 %s30, 1
        %s451 = scalar_lea.sflag [#allocation5], %s450
        %s452 = sand.u32 %s315, 1
        %s453 = smul.addr %s452, 32
        %s454 = scalar_lea.vmem [#allocation6], %s453
        %p455 = scmp.lt.s32.totalorder %s30, 1
        %s456 = scalar_select %p455, %s30, 1
        %s457 = smul.addr %s456, 4
        %s458 = smul.addr %s457, 8
        %s459 = scalar_lea.vmem %s0, %s458
        %p460 = scmp.lt.s32.totalorder %s30, 1
        %s461 = scalar_select %p460, %s30, 1
        %s462 = smul.addr %s461, 4
        %s463 = smul.addr %s462, 8
        %s464 = scalar_lea.vmem %s1, %s463
        %p465 = scmp.lt.s32.totalorder %s30, 1
        %s466 = scalar_select %p465, %s30, 1
        %s467 = smul.addr %s466, 4
        %s468 = smul.addr %s467, 8
        %s469 = scalar_lea.vmem %s2, %s468
        %v470 = vld [vmem:[%s459] sm:$0xff]
        %v471 = vld [vmem:[%s459 + $0x8] sm:$0xff]
        %v472 = vld [vmem:[%s459 + $0x10] sm:$0xff]
        %v473 = vld [vmem:[%s459 + $0x18] sm:$0xff]
        %474 = vmatprep.subr.mxu0 0.0
        %475 = vmatpush1.msra.mxu0 1.0
        %476 = vmatprep.subr.mxu0 0.0
        %477 = vmatpush1.msra.mxu0 1.0
        %478 = vmatprep.subr.mxu0 0.0
        %479 = vmatpush1.msra.mxu0 1.0
        %480 = vmatprep.subr.mxu0 0.0
        %481 = vmatpush1.msra.mxu0 1.0
        %482 = vmatprep.subr.mxu0 0.0
        %483 = vmatpush1.msra.mxu0 1.0
        %484 = vmatprep.subr.mxu0 0.0
        %485 = vmatpush1.msra.mxu0 1.0
        %486 = vmatprep.subr.mxu0 0.0
        %487 = vmatpush1.msra.mxu0 1.0
        %488 = vmatprep.subr.mxu0 0.0
        %489 = vmatpush1.msra.mxu0 1.0
        %490 = vmatprep.subr.mxu0 0.0
        %491 = vmatpush1.msra.mxu0 1.0
        %492 = vmatprep.subr.mxu0 0.0
        %493 = vmatpush1.msra.mxu0 1.0
        %494 = vmatprep.subr.mxu0 0.0
        %495 = vmatpush1.msra.mxu0 1.0
        %496 = vmatprep.subr.mxu0 0.0
        %497 = vmatpush1.msra.mxu0 1.0
        %498 = vmatprep.subr.mxu0 0.0
        %499 = vmatpush1.msra.mxu0 1.0
        %500 = vmatprep.subr.mxu0 0.0
        %501 = vmatpush1.msra.mxu0 1.0
        %502 = vmatprep.subr.mxu0 0.0
        %503 = vmatpush1.msra.mxu0 1.0
        %504 = vmatprep.subr.mxu0 0.0
        %505 = vmatpush1.msra.mxu0 1.0
        %506 = vmatprep.subr.mxu0 0.0
        %507 = vmatpush2.msra.mxu0 1.0
        %508 = vmatprep.subr.mxu0 0.0
        %509 = vmatpush2.msra.mxu0 1.0
        %510 = vmatprep.subr.mxu0 0.0
        %511 = vmatpush2.msra.mxu0 1.0
        %512 = vmatprep.subr.mxu0 0.0
        %513 = vmatpush2.msra.mxu0 1.0
        %514 = vmatprep.subr.mxu0 0.0
        %515 = vmatpush2.msra.mxu0 1.0
        %516 = vmatprep.subr.mxu0 0.0
        %517 = vmatpush2.msra.mxu0 1.0
        %518 = vmatprep.subr.mxu0 0.0
        %519 = vmatpush2.msra.mxu0 1.0
        %520 = vmatprep.subr.mxu0 0.0
        %521 = vmatpush2.msra.mxu0 1.0
        %522 = vmatprep.subr.mxu0 0.0
        %523 = vmatpush2.msra.mxu0 1.0
        %524 = vmatprep.subr.mxu0 0.0
        %525 = vmatpush2.msra.mxu0 1.0
        %526 = vmatprep.subr.mxu0 0.0
        %527 = vmatpush2.msra.mxu0 1.0
        %528 = vmatprep.subr.mxu0 0.0
        %529 = vmatpush2.msra.mxu0 1.0
        %530 = vmatprep.subr.mxu0 0.0
        %531 = vmatpush2.msra.mxu0 1.0
        %532 = vmatprep.subr.mxu0 0.0
        %533 = vmatpush2.msra.mxu0 1.0
        %534 = vmatprep.subr.mxu0 0.0
        %535 = vmatpush2.msra.mxu0 1.0
        %536 = vmatprep.subr.mxu0 0.0
        %537 = vmatpush2.msra.mxu0 1.0
        %538 = vmatprep.mubr.f32.mxu0 %v471
        %539 = vmatmul.mubr.f32.gmra.mxu0 %v470
        %v540 = vpop.f32.mrf.mxu0
        %v541 = vadd.f32 0.0, %v540
        %v542 = vpop.f32.mrf.mxu0
        %543 = vmatprep.mubr.f32.mxu0 %v473
        %544 = vmatmul.mubr.f32.gmra.mxu0 %v472
        %v545 = vpop.f32.mrf.mxu0
        %v546 = vadd.f32 0.0, %v545
        %v547 = vpop.f32.mrf.mxu0
        %548 = vdwg.mxu0
        %v549 = vmul.f32 %v541, 0.00390625
        %v550 = vmul.f32 %v546, 0.00390625
        %v551 = vld [vmem:[%s464] sm:$0xff]
        %v552 = vld [vmem:[%s464 + $0x8] sm:$0xff]
        %v553 = vld [vmem:[%s464 + $0x10] sm:$0xff]
        %v554 = vld [vmem:[%s464 + $0x18] sm:$0xff]
        %555 = vmatprep.subr.mxu0 0.0
        %556 = vmatpush1.msra.mxu0 1.0
        %557 = vmatprep.subr.mxu0 0.0
        %558 = vmatpush1.msra.mxu0 1.0
        %559 = vmatprep.subr.mxu0 0.0
        %560 = vmatpush1.msra.mxu0 1.0
        %561 = vmatprep.subr.mxu0 0.0
        %562 = vmatpush1.msra.mxu0 1.0
        %563 = vmatprep.subr.mxu0 0.0
        %564 = vmatpush1.msra.mxu0 1.0
        %565 = vmatprep.subr.mxu0 0.0
        %566 = vmatpush1.msra.mxu0 1.0
        %567 = vmatprep.subr.mxu0 0.0
        %568 = vmatpush1.msra.mxu0 1.0
        %569 = vmatprep.subr.mxu0 0.0
        %570 = vmatpush1.msra.mxu0 1.0
        %571 = vmatprep.subr.mxu0 0.0
        %572 = vmatpush1.msra.mxu0 1.0
        %573 = vmatprep.subr.mxu0 0.0
        %574 = vmatpush1.msra.mxu0 1.0
        %575 = vmatprep.subr.mxu0 0.0
        %576 = vmatpush1.msra.mxu0 1.0
        %577 = vmatprep.subr.mxu0 0.0
        %578 = vmatpush1.msra.mxu0 1.0
        %579 = vmatprep.subr.mxu0 0.0
        %580 = vmatpush1.msra.mxu0 1.0
        %581 = vmatprep.subr.mxu0 0.0
        %582 = vmatpush1.msra.mxu0 1.0
        %583 = vmatprep.subr.mxu0 0.0
        %584 = vmatpush1.msra.mxu0 1.0
        %585 = vmatprep.subr.mxu0 0.0
        %586 = vmatpush1.msra.mxu0 1.0
        %587 = vmatprep.subr.mxu0 0.0
        %588 = vmatpush2.msra.mxu0 1.0
        %589 = vmatprep.subr.mxu0 0.0
        %590 = vmatpush2.msra.mxu0 1.0
        %591 = vmatprep.subr.mxu0 0.0
        %592 = vmatpush2.msra.mxu0 1.0
        %593 = vmatprep.subr.mxu0 0.0
        %594 = vmatpush2.msra.mxu0 1.0
        %595 = vmatprep.subr.mxu0 0.0
        %596 = vmatpush2.msra.mxu0 1.0
        %597 = vmatprep.subr.mxu0 0.0
        %598 = vmatpush2.msra.mxu0 1.0
        %599 = vmatprep.subr.mxu0 0.0
        %600 = vmatpush2.msra.mxu0 1.0
        %601 = vmatprep.subr.mxu0 0.0
        %602 = vmatpush2.msra.mxu0 1.0
        %603 = vmatprep.subr.mxu0 0.0
        %604 = vmatpush2.msra.mxu0 1.0
        %605 = vmatprep.subr.mxu0 0.0
        %606 = vmatpush2.msra.mxu0 1.0
        %607 = vmatprep.subr.mxu0 0.0
        %608 = vmatpush2.msra.mxu0 1.0
        %609 = vmatprep.subr.mxu0 0.0
        %610 = vmatpush2.msra.mxu0 1.0
        %611 = vmatprep.subr.mxu0 0.0
        %612 = vmatpush2.msra.mxu0 1.0
        %613 = vmatprep.subr.mxu0 0.0
        %614 = vmatpush2.msra.mxu0 1.0
        %615 = vmatprep.subr.mxu0 0.0
        %616 = vmatpush2.msra.mxu0 1.0
        %617 = vmatprep.subr.mxu0 0.0
        %618 = vmatpush2.msra.mxu0 1.0
        %619 = vmatprep.mubr.f32.mxu0 %v552
        %620 = vmatmul.mubr.f32.gmra.mxu0 %v551
        %v621 = vpop.f32.mrf.mxu0
        %v622 = vadd.f32 0.0, %v621
        %v623 = vpop.f32.mrf.mxu0
        %624 = vmatprep.mubr.f32.mxu0 %v554
        %625 = vmatmul.mubr.f32.gmra.mxu0 %v553
        %v626 = vpop.f32.mrf.mxu0
        %v627 = vadd.f32 0.0, %v626
        %v628 = vpop.f32.mrf.mxu0
        %629 = vdwg.mxu0
        %v630 = vmul.f32 %v622, 0.00390625
        %v631 = vmul.f32 %v627, 0.00390625
        %v632 = vld [vmem:[%s469] sm:$0xff]
        %v633 = vld [vmem:[%s469 + $0x8] sm:$0xff]
        %v634 = vld [vmem:[%s469 + $0x10] sm:$0xff]
        %v635 = vld [vmem:[%s469 + $0x18] sm:$0xff]
        %636 = vmatprep.subr.mxu0 0.0
        %637 = vmatpush1.msra.mxu0 1.0
        %638 = vmatprep.subr.mxu0 0.0
        %639 = vmatpush1.msra.mxu0 1.0
        %640 = vmatprep.subr.mxu0 0.0
        %641 = vmatpush1.msra.mxu0 1.0
        %642 = vmatprep.subr.mxu0 0.0
        %643 = vmatpush1.msra.mxu0 1.0
        %644 = vmatprep.subr.mxu0 0.0
        %645 = vmatpush1.msra.mxu0 1.0
        %646 = vmatprep.subr.mxu0 0.0
        %647 = vmatpush1.msra.mxu0 1.0
        %648 = vmatprep.subr.mxu0 0.0
        %649 = vmatpush1.msra.mxu0 1.0
        %650 = vmatprep.subr.mxu0 0.0
        %651 = vmatpush1.msra.mxu0 1.0
        %652 = vmatprep.subr.mxu0 0.0
        %653 = vmatpush1.msra.mxu0 1.0
        %654 = vmatprep.subr.mxu0 0.0
        %655 = vmatpush1.msra.mxu0 1.0
        %656 = vmatprep.subr.mxu0 0.0
        %657 = vmatpush1.msra.mxu0 1.0
        %658 = vmatprep.subr.mxu0 0.0
        %659 = vmatpush1.msra.mxu0 1.0
        %660 = vmatprep.subr.mxu0 0.0
        %661 = vmatpush1.msra.mxu0 1.0
        %662 = vmatprep.subr.mxu0 0.0
        %663 = vmatpush1.msra.mxu0 1.0
        %664 = vmatprep.subr.mxu0 0.0
        %665 = vmatpush1.msra.mxu0 1.0
        %666 = vmatprep.subr.mxu0 0.0
        %667 = vmatpush1.msra.mxu0 1.0
        %668 = vmatprep.subr.mxu0 0.0
        %669 = vmatpush2.msra.mxu0 1.0
        %670 = vmatprep.subr.mxu0 0.0
        %671 = vmatpush2.msra.mxu0 1.0
        %672 = vmatprep.subr.mxu0 0.0
        %673 = vmatpush2.msra.mxu0 1.0
        %674 = vmatprep.subr.mxu0 0.0
        %675 = vmatpush2.msra.mxu0 1.0
        %676 = vmatprep.subr.mxu0 0.0
        %677 = vmatpush2.msra.mxu0 1.0
        %678 = vmatprep.subr.mxu0 0.0
        %679 = vmatpush2.msra.mxu0 1.0
        %680 = vmatprep.subr.mxu0 0.0
        %681 = vmatpush2.msra.mxu0 1.0
        %682 = vmatprep.subr.mxu0 0.0
        %683 = vmatpush2.msra.mxu0 1.0
        %684 = vmatprep.subr.mxu0 0.0
        %685 = vmatpush2.msra.mxu0 1.0
        %686 = vmatprep.subr.mxu0 0.0
        %687 = vmatpush2.msra.mxu0 1.0
        %688 = vmatprep.subr.mxu0 0.0
        %689 = vmatpush2.msra.mxu0 1.0
        %690 = vmatprep.subr.mxu0 0.0
        %691 = vmatpush2.msra.mxu0 1.0
        %692 = vmatprep.subr.mxu0 0.0
        %693 = vmatpush2.msra.mxu0 1.0
        %694 = vmatprep.subr.mxu0 0.0
        %695 = vmatpush2.msra.mxu0 1.0
        %696 = vmatprep.subr.mxu0 0.0
        %697 = vmatpush2.msra.mxu0 1.0
        %698 = vmatprep.subr.mxu0 0.0
        %699 = vmatpush2.msra.mxu0 1.0
        %700 = vmatprep.mubr.f32.mxu0 %v633
        %701 = vmatmul.mubr.f32.gmra.mxu0 %v632
        %v702 = vpop.f32.mrf.mxu0
        %v703 = vadd.f32 0.0, %v702
        %v704 = vpop.f32.mrf.mxu0
        %705 = vmatprep.mubr.f32.mxu0 %v635
        %706 = vmatmul.mubr.f32.gmra.mxu0 %v634
        %v707 = vpop.f32.mrf.mxu0
        %v708 = vadd.f32 0.0, %v707
        %v709 = vpop.f32.mrf.mxu0
        %710 = vdwg.mxu0
        %v711 = vmul.f32 %v703, 0.00390625
        %v712 = vmul.f32 %v708, 0.00390625
        %v713 = vld [vmem:[%s3] sm:$0xff]
        %v714 = vld [vmem:[%s3 + $0x8] sm:$0xf]
        %v715 = vld [vmem:[%s4] sm:$0xff]
        %v716 = vld [vmem:[%s4 + $0x8] sm:$0xff]
        %v717 = vld [vmem:[%s4 + $0x10] sm:$0xff]
        %v718 = vld [vmem:[%s4 + $0x18] sm:$0xff]
        %v719 = vld [vmem:[%s4 + $0x20] sm:$0xff]
        %v720 = vld [vmem:[%s4 + $0x28] sm:$0xff]
        %722 = vset.pattern.permute.xlu0 0
        %723 = vperm.xlu0 %722, %v549
        %v724 = vpop.permute.xlu0 %723
        %727 = vset.pattern.permute.xlu0 0
        %728 = vperm.xlu0 %727, %v550
        %v729 = vpop.permute.xlu0 %728
        %732 = vset.pattern.permute.xlu0 0
        %733 = vperm.xlu0 %732, %v630
        %v734 = vpop.permute.xlu0 %733
        %737 = vset.pattern.permute.xlu0 0
        %738 = vperm.xlu0 %737, %v631
        %v739 = vpop.permute.xlu0 %738
        %742 = vset.pattern.permute.xlu0 0
        %743 = vperm.xlu0 %742, %v711
        %v744 = vpop.permute.xlu0 %743
        %747 = vset.pattern.permute.xlu0 0
        %748 = vperm.xlu0 %747, %v712
        %v749 = vpop.permute.xlu0 %748
        %v751 = vmul.f32 %v724, %v715
        %v752 = vmul.f32 %v729, %v716
        %v753 = vmul.f32 %v734, %v717
        %v754 = vmul.f32 %v739, %v718
        %v755 = vmul.f32 %v744, %v719
        %v756 = vmul.f32 %v749, %v720
        %vm757 = vcmask 392192
        %v759 = vsel %vm757, %v713, 0
        %v762 = vsel %vm757, %v714, 0
        %764 = vmatprep.subr.mxu0 0.0
        %765 = vmatpush1.msra.mxu0 0.0
        %766 = vmatprep.subr.mxu0 0.0
        %767 = vmatpush1.msra.mxu0 0.0
        %768 = vmatprep.subr.mxu0 0.0
        %769 = vmatpush1.msra.mxu0 0.0
        %770 = vmatprep.subr.mxu0 0.0
        %771 = vmatpush1.msra.mxu0 0.0
        %772 = vmatprep.subr.mxu0 0.0
        %773 = vmatpush1.msra.mxu0 0.0
        %774 = vmatprep.subr.mxu0 0.0
        %775 = vmatpush1.msra.mxu0 0.0
        %776 = vmatprep.subr.mxu0 0.0
        %777 = vmatpush1.msra.mxu0 0.0
        %778 = vmatprep.subr.mxu0 0.0
        %779 = vmatpush1.msra.mxu0 0.0
        %780 = vmatprep.subr.mxu0 0.0
        %781 = vmatpush1.msra.mxu0 0.0
        %782 = vmatprep.subr.mxu0 0.0
        %783 = vmatpush1.msra.mxu0 0.0
        %784 = vmatprep.subr.mxu0 0.0
        %785 = vmatpush1.msra.mxu0 %v756
        %786 = vmatprep.subr.mxu0 0.0
        %787 = vmatpush1.msra.mxu0 %v755
        %788 = vmatprep.subr.mxu0 0.0
        %789 = vmatpush1.msra.mxu0 %v754
        %790 = vmatprep.subr.mxu0 0.0
        %791 = vmatpush1.msra.mxu0 %v753
        %792 = vmatprep.subr.mxu0 0.0
        %793 = vmatpush1.msra.mxu0 %v752
        %794 = vmatprep.subr.mxu0 0.0
        %795 = vmatpush1.msra.mxu0 %v751
        %796 = vmatprep.subr.mxu0 0.0
        %797 = vmatpush2.msra.mxu0 0.0
        %798 = vmatprep.subr.mxu0 0.0
        %799 = vmatpush2.msra.mxu0 0.0
        %800 = vmatprep.subr.mxu0 0.0
        %801 = vmatpush2.msra.mxu0 0.0
        %802 = vmatprep.subr.mxu0 0.0
        %803 = vmatpush2.msra.mxu0 0.0
        %804 = vmatprep.subr.mxu0 0.0
        %805 = vmatpush2.msra.mxu0 0.0
        %806 = vmatprep.subr.mxu0 0.0
        %807 = vmatpush2.msra.mxu0 0.0
        %808 = vmatprep.subr.mxu0 0.0
        %809 = vmatpush2.msra.mxu0 0.0
        %810 = vmatprep.subr.mxu0 0.0
        %811 = vmatpush2.msra.mxu0 0.0
        %812 = vmatprep.subr.mxu0 0.0
        %813 = vmatpush2.msra.mxu0 0.0
        %814 = vmatprep.subr.mxu0 0.0
        %815 = vmatpush2.msra.mxu0 0.0
        %816 = vmatprep.subr.mxu0 0.0
        %817 = vmatpush2.msra.mxu0 0.0
        %818 = vmatprep.subr.mxu0 0.0
        %819 = vmatpush2.msra.mxu0 0.0
        %820 = vmatprep.subr.mxu0 0.0
        %821 = vmatpush2.msra.mxu0 0.0
        %822 = vmatprep.subr.mxu0 0.0
        %823 = vmatpush2.msra.mxu0 0.0
        %824 = vmatprep.subr.mxu0 0.0
        %825 = vmatpush2.msra.mxu0 0.0
        %826 = vmatprep.subr.mxu0 0.0
        %827 = vmatpush2.msra.mxu0 0.0
        %828 = vmatprep.mubr.f32.mxu0 0.0
        %829 = vmatmul.mubr.f32.gmra.mxu0 %v759
        %v830 = vpop.f32.mrf.mxu0
        %v831 = vadd.f32 0.0, %v830
        %v832 = vpop.f32.mrf.mxu0
        %833 = vmatprep.mubr.f32.mxu0 0.0
        %834 = vmatmul.mubr.f32.gmra.mxu0 %v762
        %v835 = vpop.f32.mrf.mxu0
        %v836 = vadd.f32 0.0, %v835
        %v837 = vpop.f32.mrf.mxu0
        %838 = vdwg.mxu0
        %839 = vxpose.xlu0.b32.start [1/16] %v831, 128
        %840 = vxpose.xlu0.b32.cont [2/16] %v836, 128
        %841 = vxpose.xlu0.b32.cont [3/16] 0.0, 128
        %842 = vxpose.xlu0.b32.cont [4/16] 0.0, 128
        %843 = vxpose.xlu0.b32.cont [5/16] 0.0, 128
        %844 = vxpose.xlu0.b32.cont [6/16] 0.0, 128
        %845 = vxpose.xlu0.b32.cont [7/16] 0.0, 128
        %846 = vxpose.xlu0.b32.cont [8/16] 0.0, 128
        %847 = vxpose.xlu0.b32.cont [9/16] 0.0, 128
        %848 = vxpose.xlu0.b32.cont [10/16] 0.0, 128
        %849 = vxpose.xlu0.b32.cont [11/16] 0.0, 128
        %850 = vxpose.xlu0.b32.cont [12/16] 0.0, 128
        %851 = vxpose.xlu0.b32.cont [13/16] 0.0, 128
        %852 = vxpose.xlu0.b32.cont [14/16] 0.0, 128
        %853 = vxpose.xlu0.b32.cont [15/16] 0.0, 128
        %854 = vxpose.xlu0.b32.end [16/16] 0.0, 128
        %v855 = vpop.trf.xlu0
        %v856 = vpop.trf.xlu0
        %v857 = vpop.trf.xlu0
        %v858 = vpop.trf.xlu0
        %v859 = vpop.trf.xlu0
        %v860 = vpop.trf.xlu0
        %v861 = vpop.trf.xlu0
        %v862 = vpop.trf.xlu0
        %v863 = vpop.trf.xlu0
        %v864 = vpop.trf.xlu0
        %v865 = vpop.trf.xlu0
        %v866 = vpop.trf.xlu0
        %v867 = vpop.trf.xlu0
        %v868 = vpop.trf.xlu0
        %v869 = vpop.trf.xlu0
        %v870 = vpop.trf.xlu0
        %vm871 = vcmask 97280
        %v873 = vsel %vm871, %v855, 0
        %vm875 = vcmask 1043456
        %v877 = vsel %vm875, %v836, 0
        %879 = vmatprep.subr.mxu0 0.0
        %880 = vmatpush1.msra.mxu0 0.0
        %881 = vmatprep.subr.mxu0 0.0
        %882 = vmatpush1.msra.mxu0 0.0
        %883 = vmatprep.subr.mxu0 0.0
        %884 = vmatpush1.msra.mxu0 0.0
        %885 = vmatprep.subr.mxu0 0.0
        %886 = vmatpush1.msra.mxu0 0.0
        %887 = vmatprep.subr.mxu0 0.0
        %888 = vmatpush1.msra.mxu0 0.0
        %889 = vmatprep.subr.mxu0 0.0
        %890 = vmatpush1.msra.mxu0 0.0
        %891 = vmatprep.subr.mxu0 0.0
        %892 = vmatpush1.msra.mxu0 0.0
        %893 = vmatprep.subr.mxu0 0.0
        %894 = vmatpush1.msra.mxu0 0.0
        %895 = vmatprep.subr.mxu0 0.0
        %896 = vmatpush1.msra.mxu0 0.0
        %897 = vmatprep.subr.mxu0 0.0
        %898 = vmatpush1.msra.mxu0 0.0
        %899 = vmatprep.subr.mxu0 0.0
        %900 = vmatpush1.msra.mxu0 0.0
        %901 = vmatprep.subr.mxu0 0.0
        %902 = vmatpush1.msra.mxu0 0.0
        %903 = vmatprep.subr.mxu0 0.0
        %904 = vmatpush1.msra.mxu0 0.0
        %905 = vmatprep.subr.mxu0 0.0
        %906 = vmatpush1.msra.mxu0 0.0
        %907 = vmatprep.subr.mxu0 0.0
        %908 = vmatpush1.msra.mxu0 %v877
        %909 = vmatprep.subr.mxu0 0.0
        %910 = vmatpush1.msra.mxu0 %v831
        %911 = vmatprep.subr.mxu0 0.0
        %912 = vmatpush2.msra.mxu0 0.0
        %913 = vmatprep.subr.mxu0 0.0
        %914 = vmatpush2.msra.mxu0 0.0
        %915 = vmatprep.subr.mxu0 0.0
        %916 = vmatpush2.msra.mxu0 0.0
        %917 = vmatprep.subr.mxu0 0.0
        %918 = vmatpush2.msra.mxu0 0.0
        %919 = vmatprep.subr.mxu0 0.0
        %920 = vmatpush2.msra.mxu0 0.0
        %921 = vmatprep.subr.mxu0 0.0
        %922 = vmatpush2.msra.mxu0 0.0
        %923 = vmatprep.subr.mxu0 0.0
        %924 = vmatpush2.msra.mxu0 0.0
        %925 = vmatprep.subr.mxu0 0.0
        %926 = vmatpush2.msra.mxu0 0.0
        %927 = vmatprep.subr.mxu0 0.0
        %928 = vmatpush2.msra.mxu0 0.0
        %929 = vmatprep.subr.mxu0 0.0
        %930 = vmatpush2.msra.mxu0 0.0
        %931 = vmatprep.subr.mxu0 0.0
        %932 = vmatpush2.msra.mxu0 0.0
        %933 = vmatprep.subr.mxu0 0.0
        %934 = vmatpush2.msra.mxu0 0.0
        %935 = vmatprep.subr.mxu0 0.0
        %936 = vmatpush2.msra.mxu0 0.0
        %937 = vmatprep.subr.mxu0 0.0
        %938 = vmatpush2.msra.mxu0 0.0
        %939 = vmatprep.subr.mxu0 0.0
        %940 = vmatpush2.msra.mxu0 0.0
        %941 = vmatprep.subr.mxu0 0.0
        %942 = vmatpush2.msra.mxu0 0.0
        %943 = vmatprep.mubr.f32.mxu0 0.0
        %944 = vmatmul.mubr.f32.gmra.mxu0 %v873
        %v945 = vpop.f32.mrf.mxu0
        %v946 = vadd.f32 0.0, %v945
        %v947 = vpop.f32.mrf.mxu0
        %948 = vdwg.mxu0
        %v949 = vld [vmem:[%s5] sm:$0xff]
        %v950 = vld [vmem:[%s5 + $0x8] sm:$0xf]
        %v951 = vld [vmem:[%s6] sm:$0xff]
        %v952 = vld [vmem:[%s6 + $0x8] sm:$0xf]
        %954 = vset.pattern.permute.xlu0 0
        %955 = vperm.xlu0 %954, %v951
        %v956 = vpop.permute.xlu0 %955
        %959 = vset.pattern.permute.xlu0 0
        %960 = vperm.xlu0 %959, %v952
        %v961 = vpop.permute.xlu0 %960
        %v964 = vsel %vm871, %v949, 0
        %v967 = vsel %vm871, %v950, 0
        %969 = vmatprep.subr.mxu0 0.0
        %970 = vmatpush1.msra.mxu0 0.0
        %971 = vmatprep.subr.mxu0 0.0
        %972 = vmatpush1.msra.mxu0 0.0
        %973 = vmatprep.subr.mxu0 0.0
        %974 = vmatpush1.msra.mxu0 0.0
        %975 = vmatprep.subr.mxu0 0.0
        %976 = vmatpush1.msra.mxu0 0.0
        %977 = vmatprep.subr.mxu0 0.0
        %978 = vmatpush1.msra.mxu0 0.0
        %979 = vmatprep.subr.mxu0 0.0
        %980 = vmatpush1.msra.mxu0 0.0
        %981 = vmatprep.subr.mxu0 0.0
        %982 = vmatpush1.msra.mxu0 0.0
        %983 = vmatprep.subr.mxu0 0.0
        %984 = vmatpush1.msra.mxu0 0.0
        %985 = vmatprep.subr.mxu0 0.0
        %986 = vmatpush1.msra.mxu0 0.0
        %987 = vmatprep.subr.mxu0 0.0
        %988 = vmatpush1.msra.mxu0 0.0
        %989 = vmatprep.subr.mxu0 0.0
        %990 = vmatpush1.msra.mxu0 0.0
        %991 = vmatprep.subr.mxu0 0.0
        %992 = vmatpush1.msra.mxu0 0.0
        %993 = vmatprep.subr.mxu0 0.0
        %994 = vmatpush1.msra.mxu0 0.0
        %995 = vmatprep.subr.mxu0 0.0
        %996 = vmatpush1.msra.mxu0 0.0
        %997 = vmatprep.subr.mxu0 0.0
        %998 = vmatpush1.msra.mxu0 %v877
        %999 = vmatprep.subr.mxu0 0.0
        %1000 = vmatpush1.msra.mxu0 %v831
        %1001 = vmatprep.subr.mxu0 0.0
        %1002 = vmatpush2.msra.mxu0 0.0
        %1003 = vmatprep.subr.mxu0 0.0
        %1004 = vmatpush2.msra.mxu0 0.0
        %1005 = vmatprep.subr.mxu0 0.0
        %1006 = vmatpush2.msra.mxu0 0.0
        %1007 = vmatprep.subr.mxu0 0.0
        %1008 = vmatpush2.msra.mxu0 0.0
        %1009 = vmatprep.subr.mxu0 0.0
        %1010 = vmatpush2.msra.mxu0 0.0
        %1011 = vmatprep.subr.mxu0 0.0
        %1012 = vmatpush2.msra.mxu0 0.0
        %1013 = vmatprep.subr.mxu0 0.0
        %1014 = vmatpush2.msra.mxu0 0.0
        %1015 = vmatprep.subr.mxu0 0.0
        %1016 = vmatpush2.msra.mxu0 0.0
        %1017 = vmatprep.subr.mxu0 0.0
        %1018 = vmatpush2.msra.mxu0 0.0
        %1019 = vmatprep.subr.mxu0 0.0
        %1020 = vmatpush2.msra.mxu0 0.0
        %1021 = vmatprep.subr.mxu0 0.0
        %1022 = vmatpush2.msra.mxu0 0.0
        %1023 = vmatprep.subr.mxu0 0.0
        %1024 = vmatpush2.msra.mxu0 0.0
        %1025 = vmatprep.subr.mxu0 0.0
        %1026 = vmatpush2.msra.mxu0 0.0
        %1027 = vmatprep.subr.mxu0 0.0
        %1028 = vmatpush2.msra.mxu0 0.0
        %1029 = vmatprep.subr.mxu0 0.0
        %1030 = vmatpush2.msra.mxu0 0.0
        %1031 = vmatprep.subr.mxu0 0.0
        %1032 = vmatpush2.msra.mxu0 0.0
        %1033 = vmatprep.mubr.f32.mxu0 0.0
        %1034 = vmatmul.mubr.f32.gmra.mxu0 %v964
        %v1035 = vpop.f32.mrf.mxu0
        %v1036 = vadd.f32 %v956, %v1035
        %v1037 = vpop.f32.mrf.mxu0
        %1038 = vmatprep.mubr.f32.mxu0 0.0
        %1039 = vmatmul.mubr.f32.gmra.mxu0 %v967
        %v1040 = vpop.f32.mrf.mxu0
        %v1041 = vadd.f32 %v961, %v1040
        %v1042 = vpop.f32.mrf.mxu0
        %1043 = vdwg.mxu0
        %vm1044 = vcmask 31744
        %v1046 = vsel %vm1044, %v1036, 0
        %v1049 = vsel %vm1044, %v1041, 0
        %v1052 = vsel %vm875, %v946, 0
        %1054 = vmatprep.subr.mxu0 0.0
        %1055 = vmatpush1.msra.mxu0 0.0
        %1056 = vmatprep.subr.mxu0 0.0
        %1057 = vmatpush1.msra.mxu0 0.0
        %1058 = vmatprep.subr.mxu0 0.0
        %1059 = vmatpush1.msra.mxu0 0.0
        %1060 = vmatprep.subr.mxu0 0.0
        %1061 = vmatpush1.msra.mxu0 0.0
        %1062 = vmatprep.subr.mxu0 0.0
        %1063 = vmatpush1.msra.mxu0 0.0
        %1064 = vmatprep.subr.mxu0 0.0
        %1065 = vmatpush1.msra.mxu0 0.0
        %1066 = vmatprep.subr.mxu0 0.0
        %1067 = vmatpush1.msra.mxu0 0.0
        %1068 = vmatprep.subr.mxu0 0.0
        %1069 = vmatpush1.msra.mxu0 0.0
        %1070 = vmatprep.subr.mxu0 0.0
        %1071 = vmatpush1.msra.mxu0 0.0
        %1072 = vmatprep.subr.mxu0 0.0
        %1073 = vmatpush1.msra.mxu0 0.0
        %1074 = vmatprep.subr.mxu0 0.0
        %1075 = vmatpush1.msra.mxu0 0.0
        %1076 = vmatprep.subr.mxu0 0.0
        %1077 = vmatpush1.msra.mxu0 0.0
        %1078 = vmatprep.subr.mxu0 0.0
        %1079 = vmatpush1.msra.mxu0 0.0
        %1080 = vmatprep.subr.mxu0 0.0
        %1081 = vmatpush1.msra.mxu0 0.0
        %1082 = vmatprep.subr.mxu0 0.0
        %1083 = vmatpush1.msra.mxu0 0.0
        %1084 = vmatprep.subr.mxu0 0.0
        %1085 = vmatpush1.msra.mxu0 %v1052
        %1086 = vmatprep.subr.mxu0 0.0
        %1087 = vmatpush2.msra.mxu0 0.0
        %1088 = vmatprep.subr.mxu0 0.0
        %1089 = vmatpush2.msra.mxu0 0.0
        %1090 = vmatprep.subr.mxu0 0.0
        %1091 = vmatpush2.msra.mxu0 0.0
        %1092 = vmatprep.subr.mxu0 0.0
        %1093 = vmatpush2.msra.mxu0 0.0
        %1094 = vmatprep.subr.mxu0 0.0
        %1095 = vmatpush2.msra.mxu0 0.0
        %1096 = vmatprep.subr.mxu0 0.0
        %1097 = vmatpush2.msra.mxu0 0.0
        %1098 = vmatprep.subr.mxu0 0.0
        %1099 = vmatpush2.msra.mxu0 0.0
        %1100 = vmatprep.subr.mxu0 0.0
        %1101 = vmatpush2.msra.mxu0 0.0
        %1102 = vmatprep.subr.mxu0 0.0
        %1103 = vmatpush2.msra.mxu0 0.0
        %1104 = vmatprep.subr.mxu0 0.0
        %1105 = vmatpush2.msra.mxu0 0.0
        %1106 = vmatprep.subr.mxu0 0.0
        %1107 = vmatpush2.msra.mxu0 0.0
        %1108 = vmatprep.subr.mxu0 0.0
        %1109 = vmatpush2.msra.mxu0 0.0
        %1110 = vmatprep.subr.mxu0 0.0
        %1111 = vmatpush2.msra.mxu0 0.0
        %1112 = vmatprep.subr.mxu0 0.0
        %1113 = vmatpush2.msra.mxu0 0.0
        %1114 = vmatprep.subr.mxu0 0.0
        %1115 = vmatpush2.msra.mxu0 0.0
        %1116 = vmatprep.subr.mxu0 0.0
        %1117 = vmatpush2.msra.mxu0 0.0
        %1118 = vmatprep.mubr.f32.mxu0 0.0
        %1119 = vmatmul.mubr.f32.gmra.mxu0 %v1046
        %v1120 = vpop.f32.mrf.mxu0
        %v1121 = vadd.f32 0.0, %v1120
        %v1122 = vpop.f32.mrf.mxu0
        %1123 = vmatprep.mubr.f32.mxu0 0.0
        %1124 = vmatmul.mubr.f32.gmra.mxu0 %v1049
        %v1125 = vpop.f32.mrf.mxu0
        %v1126 = vadd.f32 0.0, %v1125
        %v1127 = vpop.f32.mrf.mxu0
        %1128 = vdwg.mxu0
        %1129 = vxpose.xlu0.b32.start [1/16] %v1121, 128
        %1130 = vxpose.xlu0.b32.cont [2/16] %v1126, 128
        %1131 = vxpose.xlu0.b32.cont [3/16] 0.0, 128
        %1132 = vxpose.xlu0.b32.cont [4/16] 0.0, 128
        %1133 = vxpose.xlu0.b32.cont [5/16] 0.0, 128
        %1134 = vxpose.xlu0.b32.cont [6/16] 0.0, 128
        %1135 = vxpose.xlu0.b32.cont [7/16] 0.0, 128
        %1136 = vxpose.xlu0.b32.cont [8/16] 0.0, 128
        %1137 = vxpose.xlu0.b32.cont [9/16] 0.0, 128
        %1138 = vxpose.xlu0.b32.cont [10/16] 0.0, 128
        %1139 = vxpose.xlu0.b32.cont [11/16] 0.0, 128
        %1140 = vxpose.xlu0.b32.cont [12/16] 0.0, 128
        %1141 = vxpose.xlu0.b32.cont [13/16] 0.0, 128
        %1142 = vxpose.xlu0.b32.cont [14/16] 0.0, 128
        %1143 = vxpose.xlu0.b32.cont [15/16] 0.0, 128
        %1144 = vxpose.xlu0.b32.end [16/16] 0.0, 128
        %v1145 = vpop.trf.xlu0
        %v1146 = vpop.trf.xlu0
        %v1147 = vpop.trf.xlu0
        %v1148 = vpop.trf.xlu0
        %v1149 = vpop.trf.xlu0
        %v1150 = vpop.trf.xlu0
        %v1151 = vpop.trf.xlu0
        %v1152 = vpop.trf.xlu0
        %v1153 = vpop.trf.xlu0
        %v1154 = vpop.trf.xlu0
        %v1155 = vpop.trf.xlu0
        %v1156 = vpop.trf.xlu0
        %v1157 = vpop.trf.xlu0
        %v1158 = vpop.trf.xlu0
        %v1159 = vpop.trf.xlu0
        %v1160 = vpop.trf.xlu0
        %v1162 = vsel %vm871, %v1145, 0
        %v1165 = vsel %vm875, %v1126, 0
        %1167 = vmatprep.subr.mxu0 0.0
        %1168 = vmatpush1.msra.mxu0 0.0
        %1169 = vmatprep.subr.mxu0 0.0
        %1170 = vmatpush1.msra.mxu0 0.0
        %1171 = vmatprep.subr.mxu0 0.0
        %1172 = vmatpush1.msra.mxu0 0.0
        %1173 = vmatprep.subr.mxu0 0.0
        %1174 = vmatpush1.msra.mxu0 0.0
        %1175 = vmatprep.subr.mxu0 0.0
        %1176 = vmatpush1.msra.mxu0 0.0
        %1177 = vmatprep.subr.mxu0 0.0
        %1178 = vmatpush1.msra.mxu0 0.0
        %1179 = vmatprep.subr.mxu0 0.0
        %1180 = vmatpush1.msra.mxu0 0.0
        %1181 = vmatprep.subr.mxu0 0.0
        %1182 = vmatpush1.msra.mxu0 0.0
        %1183 = vmatprep.subr.mxu0 0.0
        %1184 = vmatpush1.msra.mxu0 0.0
        %1185 = vmatprep.subr.mxu0 0.0
        %1186 = vmatpush1.msra.mxu0 0.0
        %1187 = vmatprep.subr.mxu0 0.0
        %1188 = vmatpush1.msra.mxu0 0.0
        %1189 = vmatprep.subr.mxu0 0.0
        %1190 = vmatpush1.msra.mxu0 0.0
        %1191 = vmatprep.subr.mxu0 0.0
        %1192 = vmatpush1.msra.mxu0 0.0
        %1193 = vmatprep.subr.mxu0 0.0
        %1194 = vmatpush1.msra.mxu0 0.0
        %1195 = vmatprep.subr.mxu0 0.0
        %1196 = vmatpush1.msra.mxu0 %v1165
        %1197 = vmatprep.subr.mxu0 0.0
        %1198 = vmatpush1.msra.mxu0 %v1121
        %1199 = vmatprep.subr.mxu0 0.0
        %1200 = vmatpush2.msra.mxu0 0.0
        %1201 = vmatprep.subr.mxu0 0.0
        %1202 = vmatpush2.msra.mxu0 0.0
        %1203 = vmatprep.subr.mxu0 0.0
        %1204 = vmatpush2.msra.mxu0 0.0
        %1205 = vmatprep.subr.mxu0 0.0
        %1206 = vmatpush2.msra.mxu0 0.0
        %1207 = vmatprep.subr.mxu0 0.0
        %1208 = vmatpush2.msra.mxu0 0.0
        %1209 = vmatprep.subr.mxu0 0.0
        %1210 = vmatpush2.msra.mxu0 0.0
        %1211 = vmatprep.subr.mxu0 0.0
        %1212 = vmatpush2.msra.mxu0 0.0
        %1213 = vmatprep.subr.mxu0 0.0
        %1214 = vmatpush2.msra.mxu0 0.0
        %1215 = vmatprep.subr.mxu0 0.0
        %1216 = vmatpush2.msra.mxu0 0.0
        %1217 = vmatprep.subr.mxu0 0.0
        %1218 = vmatpush2.msra.mxu0 0.0
        %1219 = vmatprep.subr.mxu0 0.0
        %1220 = vmatpush2.msra.mxu0 0.0
        %1221 = vmatprep.subr.mxu0 0.0
        %1222 = vmatpush2.msra.mxu0 0.0
        %1223 = vmatprep.subr.mxu0 0.0
        %1224 = vmatpush2.msra.mxu0 0.0
        %1225 = vmatprep.subr.mxu0 0.0
        %1226 = vmatpush2.msra.mxu0 0.0
        %1227 = vmatprep.subr.mxu0 0.0
        %1228 = vmatpush2.msra.mxu0 0.0
        %1229 = vmatprep.subr.mxu0 0.0
        %1230 = vmatpush2.msra.mxu0 0.0
        %1231 = vmatprep.mubr.f32.mxu0 0.0
        %1232 = vmatmul.mubr.f32.gmra.mxu0 %v1162
        %v1233 = vpop.f32.mrf.mxu0
        %v1234 = vadd.f32 0.0, %v1233
        %v1235 = vpop.f32.mrf.mxu0
        %1236 = vdwg.mxu0
        %s1237 = scalar_lea.vmem %s5, 16
        %v1238 = vld [vmem:[%s1237] sm:$0xff]
        %v1239 = vld [vmem:[%s1237 + $0x8] sm:$0xf]
        %s1240 = scalar_lea.vmem %s6, 16
        %v1241 = vld [vmem:[%s1240] sm:$0xff]
        %v1242 = vld [vmem:[%s1240 + $0x8] sm:$0xf]
        %1244 = vset.pattern.permute.xlu0 0
        %1245 = vperm.xlu0 %1244, %v1241
        %v1246 = vpop.permute.xlu0 %1245
        %1249 = vset.pattern.permute.xlu0 0
        %1250 = vperm.xlu0 %1249, %v1242
        %v1251 = vpop.permute.xlu0 %1250
        %v1254 = vsel %vm871, %v1238, 0
        %v1257 = vsel %vm871, %v1239, 0
        %1259 = vmatprep.subr.mxu0 0.0
        %1260 = vmatpush1.msra.mxu0 0.0
        %1261 = vmatprep.subr.mxu0 0.0
        %1262 = vmatpush1.msra.mxu0 0.0
        %1263 = vmatprep.subr.mxu0 0.0
        %1264 = vmatpush1.msra.mxu0 0.0
        %1265 = vmatprep.subr.mxu0 0.0
        %1266 = vmatpush1.msra.mxu0 0.0
        %1267 = vmatprep.subr.mxu0 0.0
        %1268 = vmatpush1.msra.mxu0 0.0
        %1269 = vmatprep.subr.mxu0 0.0
        %1270 = vmatpush1.msra.mxu0 0.0
        %1271 = vmatprep.subr.mxu0 0.0
        %1272 = vmatpush1.msra.mxu0 0.0
        %1273 = vmatprep.subr.mxu0 0.0
        %1274 = vmatpush1.msra.mxu0 0.0
        %1275 = vmatprep.subr.mxu0 0.0
        %1276 = vmatpush1.msra.mxu0 0.0
        %1277 = vmatprep.subr.mxu0 0.0
        %1278 = vmatpush1.msra.mxu0 0.0
        %1279 = vmatprep.subr.mxu0 0.0
        %1280 = vmatpush1.msra.mxu0 0.0
        %1281 = vmatprep.subr.mxu0 0.0
        %1282 = vmatpush1.msra.mxu0 0.0
        %1283 = vmatprep.subr.mxu0 0.0
        %1284 = vmatpush1.msra.mxu0 0.0
        %1285 = vmatprep.subr.mxu0 0.0
        %1286 = vmatpush1.msra.mxu0 0.0
        %1287 = vmatprep.subr.mxu0 0.0
        %1288 = vmatpush1.msra.mxu0 %v1165
        %1289 = vmatprep.subr.mxu0 0.0
        %1290 = vmatpush1.msra.mxu0 %v1121
        %1291 = vmatprep.subr.mxu0 0.0
        %1292 = vmatpush2.msra.mxu0 0.0
        %1293 = vmatprep.subr.mxu0 0.0
        %1294 = vmatpush2.msra.mxu0 0.0
        %1295 = vmatprep.subr.mxu0 0.0
        %1296 = vmatpush2.msra.mxu0 0.0
        %1297 = vmatprep.subr.mxu0 0.0
        %1298 = vmatpush2.msra.mxu0 0.0
        %1299 = vmatprep.subr.mxu0 0.0
        %1300 = vmatpush2.msra.mxu0 0.0
        %1301 = vmatprep.subr.mxu0 0.0
        %1302 = vmatpush2.msra.mxu0 0.0
        %1303 = vmatprep.subr.mxu0 0.0
        %1304 = vmatpush2.msra.mxu0 0.0
        %1305 = vmatprep.subr.mxu0 0.0
        %1306 = vmatpush2.msra.mxu0 0.0
        %1307 = vmatprep.subr.mxu0 0.0
        %1308 = vmatpush2.msra.mxu0 0.0
        %1309 = vmatprep.subr.mxu0 0.0
        %1310 = vmatpush2.msra.mxu0 0.0
        %1311 = vmatprep.subr.mxu0 0.0
        %1312 = vmatpush2.msra.mxu0 0.0
        %1313 = vmatprep.subr.mxu0 0.0
        %1314 = vmatpush2.msra.mxu0 0.0
        %1315 = vmatprep.subr.mxu0 0.0
        %1316 = vmatpush2.msra.mxu0 0.0
        %1317 = vmatprep.subr.mxu0 0.0
        %1318 = vmatpush2.msra.mxu0 0.0
        %1319 = vmatprep.subr.mxu0 0.0
        %1320 = vmatpush2.msra.mxu0 0.0
        %1321 = vmatprep.subr.mxu0 0.0
        %1322 = vmatpush2.msra.mxu0 0.0
        %1323 = vmatprep.mubr.f32.mxu0 0.0
        %1324 = vmatmul.mubr.f32.gmra.mxu0 %v1254
        %v1325 = vpop.f32.mrf.mxu0
        %v1326 = vadd.f32 %v1246, %v1325
        %v1327 = vpop.f32.mrf.mxu0
        %1328 = vmatprep.mubr.f32.mxu0 0.0
        %1329 = vmatmul.mubr.f32.gmra.mxu0 %v1257
        %v1330 = vpop.f32.mrf.mxu0
        %v1331 = vadd.f32 %v1251, %v1330
        %v1332 = vpop.f32.mrf.mxu0
        %1333 = vdwg.mxu0
        %v1335 = vsel %vm1044, %v1326, 0
        %v1338 = vsel %vm1044, %v1331, 0
        %v1341 = vsel %vm875, %v1234, 0
        %1343 = vmatprep.subr.mxu0 0.0
        %1344 = vmatpush1.msra.mxu0 0.0
        %1345 = vmatprep.subr.mxu0 0.0
        %1346 = vmatpush1.msra.mxu0 0.0
        %1347 = vmatprep.subr.mxu0 0.0
        %1348 = vmatpush1.msra.mxu0 0.0
        %1349 = vmatprep.subr.mxu0 0.0
        %1350 = vmatpush1.msra.mxu0 0.0
        %1351 = vmatprep.subr.mxu0 0.0
        %1352 = vmatpush1.msra.mxu0 0.0
        %1353 = vmatprep.subr.mxu0 0.0
        %1354 = vmatpush1.msra.mxu0 0.0
        %1355 = vmatprep.subr.mxu0 0.0
        %1356 = vmatpush1.msra.mxu0 0.0
        %1357 = vmatprep.subr.mxu0 0.0
        %1358 = vmatpush1.msra.mxu0 0.0
        %1359 = vmatprep.subr.mxu0 0.0
        %1360 = vmatpush1.msra.mxu0 0.0
        %1361 = vmatprep.subr.mxu0 0.0
        %1362 = vmatpush1.msra.mxu0 0.0
        %1363 = vmatprep.subr.mxu0 0.0
        %1364 = vmatpush1.msra.mxu0 0.0
        %1365 = vmatprep.subr.mxu0 0.0
        %1366 = vmatpush1.msra.mxu0 0.0
        %1367 = vmatprep.subr.mxu0 0.0
        %1368 = vmatpush1.msra.mxu0 0.0
        %1369 = vmatprep.subr.mxu0 0.0
        %1370 = vmatpush1.msra.mxu0 0.0
        %1371 = vmatprep.subr.mxu0 0.0
        %1372 = vmatpush1.msra.mxu0 0.0
        %1373 = vmatprep.subr.mxu0 0.0
        %1374 = vmatpush1.msra.mxu0 %v1341
        %1375 = vmatprep.subr.mxu0 0.0
        %1376 = vmatpush2.msra.mxu0 0.0
        %1377 = vmatprep.subr.mxu0 0.0
        %1378 = vmatpush2.msra.mxu0 0.0
        %1379 = vmatprep.subr.mxu0 0.0
        %1380 = vmatpush2.msra.mxu0 0.0
        %1381 = vmatprep.subr.mxu0 0.0
        %1382 = vmatpush2.msra.mxu0 0.0
        %1383 = vmatprep.subr.mxu0 0.0
        %1384 = vmatpush2.msra.mxu0 0.0
        %1385 = vmatprep.subr.mxu0 0.0
        %1386 = vmatpush2.msra.mxu0 0.0
        %1387 = vmatprep.subr.mxu0 0.0
        %1388 = vmatpush2.msra.mxu0 0.0
        %1389 = vmatprep.subr.mxu0 0.0
        %1390 = vmatpush2.msra.mxu0 0.0
        %1391 = vmatprep.subr.mxu0 0.0
        %1392 = vmatpush2.msra.mxu0 0.0
        %1393 = vmatprep.subr.mxu0 0.0
        %1394 = vmatpush2.msra.mxu0 0.0
        %1395 = vmatprep.subr.mxu0 0.0
        %1396 = vmatpush2.msra.mxu0 0.0
        %1397 = vmatprep.subr.mxu0 0.0
        %1398 = vmatpush2.msra.mxu0 0.0
        %1399 = vmatprep.subr.mxu0 0.0
        %1400 = vmatpush2.msra.mxu0 0.0
        %1401 = vmatprep.subr.mxu0 0.0
        %1402 = vmatpush2.msra.mxu0 0.0
        %1403 = vmatprep.subr.mxu0 0.0
        %1404 = vmatpush2.msra.mxu0 0.0
        %1405 = vmatprep.subr.mxu0 0.0
        %1406 = vmatpush2.msra.mxu0 0.0
        %1407 = vmatprep.mubr.f32.mxu0 0.0
        %1408 = vmatmul.mubr.f32.gmra.mxu0 %v1335
        %v1409 = vpop.f32.mrf.mxu0
        %v1410 = vadd.f32 0.0, %v1409
        %v1411 = vpop.f32.mrf.mxu0
        %1412 = vmatprep.mubr.f32.mxu0 0.0
        %1413 = vmatmul.mubr.f32.gmra.mxu0 %v1338
        %v1414 = vpop.f32.mrf.mxu0
        %v1415 = vadd.f32 0.0, %v1414
        %v1416 = vpop.f32.mrf.mxu0
        %1417 = vdwg.mxu0
        %v1418 = vmax.f32 %v1410, 0.0
        %v1419 = vmax.f32 %v1415, 0.0
        %v1420 = vld [vmem:[%s7] sm:$0xff]
        %v1421 = vld [vmem:[%s7 + $0x8] sm:$0xff]
        %v1422 = vld [vmem:[%s7 + $0x10] sm:$0xff]
        %v1423 = vld [vmem:[%s7 + $0x18] sm:$0xff]
        %v1424 = vld [vmem:[%s7 + $0x20] sm:$0xff]
        %v1425 = vld [vmem:[%s7 + $0x28] sm:$0xff]
        %v1426 = vld [vmem:[%s7 + $0x30] sm:$0xff]
        %v1427 = vld [vmem:[%s7 + $0x38] sm:$0xff]
        %v1428 = vld [vmem:[%s7 + $0x40] sm:$0xff]
        %v1429 = vld [vmem:[%s7 + $0x48] sm:$0xff]
        %v1430 = vld [vmem:[%s7 + $0x50] sm:$0xff]
        %v1431 = vld [vmem:[%s7 + $0x58] sm:$0xff]
        %v1432 = vld [vmem:[%s7 + $0x60] sm:$0xff]
        %v1433 = vld [vmem:[%s7 + $0x68] sm:$0xff]
        %v1434 = vld [vmem:[%s7 + $0x70] sm:$0xff]
        %v1435 = vld [vmem:[%s7 + $0x78] sm:$0xff]
        %v1436 = vld [vmem:[%s7 + $0x80] sm:$0xff]
        %v1437 = vld [vmem:[%s7 + $0x88] sm:$0xff]
        %v1438 = vld [vmem:[%s7 + $0x90] sm:$0xff]
        %v1439 = vld [vmem:[%s7 + $0x98] sm:$0xff]
        %v1440 = vld [vmem:[%s7 + $0xa0] sm:$0xff]
        %v1441 = vld [vmem:[%s7 + $0xa8] sm:$0xff]
        %v1442 = vld [vmem:[%s7 + $0xb0] sm:$0xff]
        %v1443 = vld [vmem:[%s7 + $0xb8] sm:$0xff]
        %v1445 = vsel %vm871, %v1420, 0
        %v1448 = vsel %vm871, %v1421, 0
        %v1451 = vsel %vm871, %v1422, 0
        %v1454 = vsel %vm871, %v1423, 0
        %v1457 = vsel %vm871, %v1424, 0
        %v1460 = vsel %vm871, %v1425, 0
        %v1463 = vsel %vm871, %v1426, 0
        %v1466 = vsel %vm871, %v1427, 0
        %v1469 = vsel %vm871, %v1428, 0
        %v1472 = vsel %vm871, %v1429, 0
        %v1475 = vsel %vm871, %v1430, 0
        %v1478 = vsel %vm871, %v1431, 0
        %v1481 = vsel %vm871, %v1432, 0
        %v1484 = vsel %vm871, %v1433, 0
        %v1487 = vsel %vm871, %v1434, 0
        %v1490 = vsel %vm871, %v1435, 0
        %v1493 = vsel %vm871, %v1436, 0
        %v1496 = vsel %vm871, %v1437, 0
        %v1499 = vsel %vm871, %v1438, 0
        %v1502 = vsel %vm871, %v1439, 0
        %v1505 = vsel %vm871, %v1440, 0
        %v1508 = vsel %vm871, %v1441, 0
        %v1511 = vsel %vm871, %v1442, 0
        %v1514 = vsel %vm871, %v1443, 0
        %v1517 = vsel %vm875, %v1419, 0
        %1519 = vmatprep.subr.mxu0 0.0
        %1520 = vmatpush1.msra.mxu0 0.0
        %1521 = vmatprep.subr.mxu0 0.0
        %1522 = vmatpush1.msra.mxu0 0.0
        %1523 = vmatprep.subr.mxu0 0.0
        %1524 = vmatpush1.msra.mxu0 0.0
        %1525 = vmatprep.subr.mxu0 0.0
        %1526 = vmatpush1.msra.mxu0 0.0
        %1527 = vmatprep.subr.mxu0 0.0
        %1528 = vmatpush1.msra.mxu0 0.0
        %1529 = vmatprep.subr.mxu0 0.0
        %1530 = vmatpush1.msra.mxu0 0.0
        %1531 = vmatprep.subr.mxu0 0.0
        %1532 = vmatpush1.msra.mxu0 0.0
        %1533 = vmatprep.subr.mxu0 0.0
        %1534 = vmatpush1.msra.mxu0 0.0
        %1535 = vmatprep.subr.mxu0 0.0
        %1536 = vmatpush1.msra.mxu0 0.0
        %1537 = vmatprep.subr.mxu0 0.0
        %1538 = vmatpush1.msra.mxu0 0.0
        %1539 = vmatprep.subr.mxu0 0.0
        %1540 = vmatpush1.msra.mxu0 0.0
        %1541 = vmatprep.subr.mxu0 0.0
        %1542 = vmatpush1.msra.mxu0 0.0
        %1543 = vmatprep.subr.mxu0 0.0
        %1544 = vmatpush1.msra.mxu0 0.0
        %1545 = vmatprep.subr.mxu0 0.0
        %1546 = vmatpush1.msra.mxu0 0.0
        %1547 = vmatprep.subr.mxu0 0.0
        %1548 = vmatpush1.msra.mxu0 %v1517
        %1549 = vmatprep.subr.mxu0 0.0
        %1550 = vmatpush1.msra.mxu0 %v1418
        %1551 = vmatprep.subr.mxu0 0.0
        %1552 = vmatpush2.msra.mxu0 0.0
        %1553 = vmatprep.subr.mxu0 0.0
        %1554 = vmatpush2.msra.mxu0 0.0
        %1555 = vmatprep.subr.mxu0 0.0
        %1556 = vmatpush2.msra.mxu0 0.0
        %1557 = vmatprep.subr.mxu0 0.0
        %1558 = vmatpush2.msra.mxu0 0.0
        %1559 = vmatprep.subr.mxu0 0.0
        %1560 = vmatpush2.msra.mxu0 0.0
        %1561 = vmatprep.subr.mxu0 0.0
        %1562 = vmatpush2.msra.mxu0 0.0
        %1563 = vmatprep.subr.mxu0 0.0
        %1564 = vmatpush2.msra.mxu0 0.0
        %1565 = vmatprep.subr.mxu0 0.0
        %1566 = vmatpush2.msra.mxu0 0.0
        %1567 = vmatprep.subr.mxu0 0.0
        %1568 = vmatpush2.msra.mxu0 0.0
        %1569 = vmatprep.subr.mxu0 0.0
        %1570 = vmatpush2.msra.mxu0 0.0
        %1571 = vmatprep.subr.mxu0 0.0
        %1572 = vmatpush2.msra.mxu0 0.0
        %1573 = vmatprep.subr.mxu0 0.0
        %1574 = vmatpush2.msra.mxu0 0.0
        %1575 = vmatprep.subr.mxu0 0.0
        %1576 = vmatpush2.msra.mxu0 0.0
        %1577 = vmatprep.subr.mxu0 0.0
        %1578 = vmatpush2.msra.mxu0 0.0
        %1579 = vmatprep.subr.mxu0 0.0
        %1580 = vmatpush2.msra.mxu0 0.0
        %1581 = vmatprep.subr.mxu0 0.0
        %1582 = vmatpush2.msra.mxu0 0.0
        %1583 = vmatprep.mubr.f32.mxu0 0.0
        %1584 = vmatmul.mubr.f32.gmra.mxu0 %v1445
        %v1585 = vpop.f32.mrf.mxu0
        %v1586 = vadd.f32 0.0, %v1585
        %v1587 = vpop.f32.mrf.mxu0
        %1588 = vmatprep.mubr.f32.mxu0 0.0
        %1589 = vmatmul.mubr.f32.gmra.mxu0 %v1448
        %v1590 = vpop.f32.mrf.mxu0
        %v1591 = vadd.f32 0.0, %v1590
        %v1592 = vpop.f32.mrf.mxu0
        %1593 = vmatprep.mubr.f32.mxu0 0.0
        %1594 = vmatmul.mubr.f32.gmra.mxu0 %v1451
        %v1595 = vpop.f32.mrf.mxu0
        %v1596 = vadd.f32 0.0, %v1595
        %v1597 = vpop.f32.mrf.mxu0
        %1598 = vmatprep.mubr.f32.mxu0 0.0
        %1599 = vmatmul.mubr.f32.gmra.mxu0 %v1454
        %v1600 = vpop.f32.mrf.mxu0
        %v1601 = vadd.f32 0.0, %v1600
        %v1602 = vpop.f32.mrf.mxu0
        %1603 = vmatprep.mubr.f32.mxu0 0.0
        %1604 = vmatmul.mubr.f32.gmra.mxu0 %v1457
        %v1605 = vpop.f32.mrf.mxu0
        %v1606 = vadd.f32 0.0, %v1605
        %v1607 = vpop.f32.mrf.mxu0
        %1608 = vmatprep.mubr.f32.mxu0 0.0
        %1609 = vmatmul.mubr.f32.gmra.mxu0 %v1460
        %v1610 = vpop.f32.mrf.mxu0
        %v1611 = vadd.f32 0.0, %v1610
        %v1612 = vpop.f32.mrf.mxu0
        %1613 = vmatprep.mubr.f32.mxu0 0.0
        %1614 = vmatmul.mubr.f32.gmra.mxu0 %v1463
        %v1615 = vpop.f32.mrf.mxu0
        %v1616 = vadd.f32 0.0, %v1615
        %v1617 = vpop.f32.mrf.mxu0
        %1618 = vmatprep.mubr.f32.mxu0 0.0
        %1619 = vmatmul.mubr.f32.gmra.mxu0 %v1466
        %v1620 = vpop.f32.mrf.mxu0
        %v1621 = vadd.f32 0.0, %v1620
        %v1622 = vpop.f32.mrf.mxu0
        %1623 = vmatprep.mubr.f32.mxu0 0.0
        %1624 = vmatmul.mubr.f32.gmra.mxu0 %v1469
        %v1625 = vpop.f32.mrf.mxu0
        %v1626 = vadd.f32 0.0, %v1625
        %v1627 = vpop.f32.mrf.mxu0
        %1628 = vmatprep.mubr.f32.mxu0 0.0
        %1629 = vmatmul.mubr.f32.gmra.mxu0 %v1472
        %v1630 = vpop.f32.mrf.mxu0
        %v1631 = vadd.f32 0.0, %v1630
        %v1632 = vpop.f32.mrf.mxu0
        %1633 = vmatprep.mubr.f32.mxu0 0.0
        %1634 = vmatmul.mubr.f32.gmra.mxu0 %v1475
        %v1635 = vpop.f32.mrf.mxu0
        %v1636 = vadd.f32 0.0, %v1635
        %v1637 = vpop.f32.mrf.mxu0
        %1638 = vmatprep.mubr.f32.mxu0 0.0
        %1639 = vmatmul.mubr.f32.gmra.mxu0 %v1478
        %v1640 = vpop.f32.mrf.mxu0
        %v1641 = vadd.f32 0.0, %v1640
        %v1642 = vpop.f32.mrf.mxu0
        %1643 = vmatprep.mubr.f32.mxu0 0.0
        %1644 = vmatmul.mubr.f32.gmra.mxu0 %v1481
        %v1645 = vpop.f32.mrf.mxu0
        %v1646 = vadd.f32 0.0, %v1645
        %v1647 = vpop.f32.mrf.mxu0
        %1648 = vmatprep.mubr.f32.mxu0 0.0
        %1649 = vmatmul.mubr.f32.gmra.mxu0 %v1484
        %v1650 = vpop.f32.mrf.mxu0
        %v1651 = vadd.f32 0.0, %v1650
        %v1652 = vpop.f32.mrf.mxu0
        %1653 = vmatprep.mubr.f32.mxu0 0.0
        %1654 = vmatmul.mubr.f32.gmra.mxu0 %v1487
        %v1655 = vpop.f32.mrf.mxu0
        %v1656 = vadd.f32 0.0, %v1655
        %v1657 = vpop.f32.mrf.mxu0
        %1658 = vmatprep.mubr.f32.mxu0 0.0
        %1659 = vmatmul.mubr.f32.gmra.mxu0 %v1490
        %v1660 = vpop.f32.mrf.mxu0
        %v1661 = vadd.f32 0.0, %v1660
        %v1662 = vpop.f32.mrf.mxu0
        %1663 = vmatprep.mubr.f32.mxu0 0.0
        %1664 = vmatmul.mubr.f32.gmra.mxu0 %v1493
        %v1665 = vpop.f32.mrf.mxu0
        %v1666 = vadd.f32 0.0, %v1665
        %v1667 = vpop.f32.mrf.mxu0
        %1668 = vmatprep.mubr.f32.mxu0 0.0
        %1669 = vmatmul.mubr.f32.gmra.mxu0 %v1496
        %v1670 = vpop.f32.mrf.mxu0
        %v1671 = vadd.f32 0.0, %v1670
        %v1672 = vpop.f32.mrf.mxu0
        %1673 = vmatprep.mubr.f32.mxu0 0.0
        %1674 = vmatmul.mubr.f32.gmra.mxu0 %v1499
        %v1675 = vpop.f32.mrf.mxu0
        %v1676 = vadd.f32 0.0, %v1675
        %v1677 = vpop.f32.mrf.mxu0
        %1678 = vmatprep.mubr.f32.mxu0 0.0
        %1679 = vmatmul.mubr.f32.gmra.mxu0 %v1502
        %v1680 = vpop.f32.mrf.mxu0
        %v1681 = vadd.f32 0.0, %v1680
        %v1682 = vpop.f32.mrf.mxu0
        %1683 = vmatprep.mubr.f32.mxu0 0.0
        %1684 = vmatmul.mubr.f32.gmra.mxu0 %v1505
        %v1685 = vpop.f32.mrf.mxu0
        %v1686 = vadd.f32 0.0, %v1685
        %v1687 = vpop.f32.mrf.mxu0
        %1688 = vmatprep.mubr.f32.mxu0 0.0
        %1689 = vmatmul.mubr.f32.gmra.mxu0 %v1508
        %v1690 = vpop.f32.mrf.mxu0
        %v1691 = vadd.f32 0.0, %v1690
        %v1692 = vpop.f32.mrf.mxu0
        %1693 = vmatprep.mubr.f32.mxu0 0.0
        %1694 = vmatmul.mubr.f32.gmra.mxu0 %v1511
        %v1695 = vpop.f32.mrf.mxu0
        %v1696 = vadd.f32 0.0, %v1695
        %v1697 = vpop.f32.mrf.mxu0
        %1698 = vmatprep.mubr.f32.mxu0 0.0
        %1699 = vmatmul.mubr.f32.gmra.mxu0 %v1514
        %v1700 = vpop.f32.mrf.mxu0
        %v1701 = vadd.f32 0.0, %v1700
        %v1702 = vpop.f32.mrf.mxu0
        %1703 = vdwg.mxu0
        %v1704 = vld [vmem:[%s8] sm:$0xff]
        %v1705 = vld [vmem:[%s8 + $0x8] sm:$0xff]
        %v1706 = vld [vmem:[%s8 + $0x10] sm:$0xff]
        %v1707 = vld [vmem:[%s8 + $0x18] sm:$0xff]
        %v1708 = vld [vmem:[%s8 + $0x20] sm:$0xff]
        %v1709 = vld [vmem:[%s8 + $0x28] sm:$0xff]
        %v1710 = vld [vmem:[%s8 + $0x30] sm:$0xff]
        %v1711 = vld [vmem:[%s8 + $0x38] sm:$0xff]
        %v1712 = vld [vmem:[%s8 + $0x40] sm:$0xff]
        %v1713 = vld [vmem:[%s8 + $0x48] sm:$0xff]
        %v1714 = vld [vmem:[%s8 + $0x50] sm:$0xff]
        %v1715 = vld [vmem:[%s8 + $0x58] sm:$0xff]
        %v1716 = vld [vmem:[%s8 + $0x60] sm:$0xff]
        %v1717 = vld [vmem:[%s8 + $0x68] sm:$0xff]
        %v1718 = vld [vmem:[%s8 + $0x70] sm:$0xff]
        %v1719 = vld [vmem:[%s8 + $0x78] sm:$0xff]
        %v1720 = vld [vmem:[%s8 + $0x80] sm:$0xff]
        %v1721 = vld [vmem:[%s8 + $0x88] sm:$0xff]
        %v1722 = vld [vmem:[%s8 + $0x90] sm:$0xff]
        %v1723 = vld [vmem:[%s8 + $0x98] sm:$0xff]
        %v1724 = vld [vmem:[%s8 + $0xa0] sm:$0xff]
        %v1725 = vld [vmem:[%s8 + $0xa8] sm:$0xff]
        %v1726 = vld [vmem:[%s8 + $0xb0] sm:$0xff]
        %v1727 = vld [vmem:[%s8 + $0xb8] sm:$0xff]
        %v1728 = vmul.f32 %v1586, %v1704
        %v1729 = vmul.f32 %v1591, %v1705
        %v1730 = vmul.f32 %v1596, %v1706
        %v1731 = vmul.f32 %v1601, %v1707
        %v1732 = vmul.f32 %v1606, %v1708
        %v1733 = vmul.f32 %v1611, %v1709
        %v1734 = vmul.f32 %v1616, %v1710
        %v1735 = vmul.f32 %v1621, %v1711
        %v1736 = vmul.f32 %v1626, %v1712
        %v1737 = vmul.f32 %v1631, %v1713
        %v1738 = vmul.f32 %v1636, %v1714
        %v1739 = vmul.f32 %v1641, %v1715
        %v1740 = vmul.f32 %v1646, %v1716
        %v1741 = vmul.f32 %v1651, %v1717
        %v1742 = vmul.f32 %v1656, %v1718
        %v1743 = vmul.f32 %v1661, %v1719
        %v1744 = vmul.f32 %v1666, %v1720
        %v1745 = vmul.f32 %v1671, %v1721
        %v1746 = vmul.f32 %v1676, %v1722
        %v1747 = vmul.f32 %v1681, %v1723
        %v1748 = vmul.f32 %v1686, %v1724
        %v1749 = vmul.f32 %v1691, %v1725
        %v1750 = vmul.f32 %v1696, %v1726
        %v1751 = vmul.f32 %v1701, %v1727
        %v1752 = vsel %vm1044, %v1728, 0.0
        %1753 = vadd.xlane.f32.xlu0 %v1752
        %v1754 = vpop.xlane.xlu0 %1753
        %v1755 = vsel %vm1044, %v1729, 0.0
        %1756 = vadd.xlane.f32.xlu0 %v1755
        %v1757 = vpop.xlane.xlu0 %1756
        %v1758 = vsel %vm1044, %v1730, 0.0
        %1759 = vadd.xlane.f32.xlu0 %v1758
        %v1760 = vpop.xlane.xlu0 %1759
        %v1761 = vsel %vm1044, %v1731, 0.0
        %1762 = vadd.xlane.f32.xlu0 %v1761
        %v1763 = vpop.xlane.xlu0 %1762
        %v1764 = vsel %vm1044, %v1732, 0.0
        %1765 = vadd.xlane.f32.xlu0 %v1764
        %v1766 = vpop.xlane.xlu0 %1765
        %v1767 = vsel %vm1044, %v1733, 0.0
        %1768 = vadd.xlane.f32.xlu0 %v1767
        %v1769 = vpop.xlane.xlu0 %1768
        %v1770 = vsel %vm1044, %v1734, 0.0
        %1771 = vadd.xlane.f32.xlu0 %v1770
        %v1772 = vpop.xlane.xlu0 %1771
        %v1773 = vsel %vm1044, %v1735, 0.0
        %1774 = vadd.xlane.f32.xlu0 %v1773
        %v1775 = vpop.xlane.xlu0 %1774
        %v1776 = vsel %vm1044, %v1736, 0.0
        %1777 = vadd.xlane.f32.xlu0 %v1776
        %v1778 = vpop.xlane.xlu0 %1777
        %v1779 = vsel %vm1044, %v1737, 0.0
        %1780 = vadd.xlane.f32.xlu0 %v1779
        %v1781 = vpop.xlane.xlu0 %1780
        %v1782 = vsel %vm1044, %v1738, 0.0
        %1783 = vadd.xlane.f32.xlu0 %v1782
        %v1784 = vpop.xlane.xlu0 %1783
        %v1785 = vsel %vm1044, %v1739, 0.0
        %1786 = vadd.xlane.f32.xlu0 %v1785
        %v1787 = vpop.xlane.xlu0 %1786
        %v1788 = vsel %vm1044, %v1740, 0.0
        %1789 = vadd.xlane.f32.xlu0 %v1788
        %v1790 = vpop.xlane.xlu0 %1789
        %v1791 = vsel %vm1044, %v1741, 0.0
        %1792 = vadd.xlane.f32.xlu0 %v1791
        %v1793 = vpop.xlane.xlu0 %1792
        %v1794 = vsel %vm1044, %v1742, 0.0
        %1795 = vadd.xlane.f32.xlu0 %v1794
        %v1796 = vpop.xlane.xlu0 %1795
        %v1797 = vsel %vm1044, %v1743, 0.0
        %1798 = vadd.xlane.f32.xlu0 %v1797
        %v1799 = vpop.xlane.xlu0 %1798
        %v1800 = vsel %vm1044, %v1744, 0.0
        %1801 = vadd.xlane.f32.xlu0 %v1800
        %v1802 = vpop.xlane.xlu0 %1801
        %v1803 = vsel %vm1044, %v1745, 0.0
        %1804 = vadd.xlane.f32.xlu0 %v1803
        %v1805 = vpop.xlane.xlu0 %1804
        %v1806 = vsel %vm1044, %v1746, 0.0
        %1807 = vadd.xlane.f32.xlu0 %v1806
        %v1808 = vpop.xlane.xlu0 %1807
        %v1809 = vsel %vm1044, %v1747, 0.0
        %1810 = vadd.xlane.f32.xlu0 %v1809
        %v1811 = vpop.xlane.xlu0 %1810
        %v1812 = vsel %vm1044, %v1748, 0.0
        %1813 = vadd.xlane.f32.xlu0 %v1812
        %v1814 = vpop.xlane.xlu0 %1813
        %v1815 = vsel %vm1044, %v1749, 0.0
        %1816 = vadd.xlane.f32.xlu0 %v1815
        %v1817 = vpop.xlane.xlu0 %1816
        %v1818 = vsel %vm1044, %v1750, 0.0
        %1819 = vadd.xlane.f32.xlu0 %v1818
        %v1820 = vpop.xlane.xlu0 %1819
        %v1821 = vsel %vm1044, %v1751, 0.0
        %1822 = vadd.xlane.f32.xlu0 %v1821
        %v1823 = vpop.xlane.xlu0 %1822
        %v1824 = vld [vmem:[%s9] sm:$0xff]
        %v1825 = vld [vmem:[%s9 + $0x8] sm:$0xff]
        %v1826 = vld [vmem:[%s9 + $0x10] sm:$0xff]
        %v1827 = vld [vmem:[%s9 + $0x18] sm:$0xff]
        %v1828 = vld [vmem:[%s9 + $0x20] sm:$0xff]
        %v1829 = vld [vmem:[%s9 + $0x28] sm:$0xff]
        %v1830 = vadd.f32 %v1824, %v1754
        %v1831 = vadd.f32 %v1825, %v1757
        %v1832 = vadd.f32 %v1826, %v1760
        %v1833 = vadd.f32 %v1827, %v1763
        %v1834 = vadd.f32 %v1828, %v1766
        %v1835 = vadd.f32 %v1829, %v1769
        %v1836 = vadd.f32 %v1830, %v1772
        %v1837 = vadd.f32 %v1831, %v1775
        %v1838 = vadd.f32 %v1832, %v1778
        %v1839 = vadd.f32 %v1833, %v1781
        %v1840 = vadd.f32 %v1834, %v1784
        %v1841 = vadd.f32 %v1835, %v1787
        %v1842 = vadd.f32 %v1836, %v1790
        %v1843 = vadd.f32 %v1837, %v1793
        %v1844 = vadd.f32 %v1838, %v1796
        %v1845 = vadd.f32 %v1839, %v1799
        %v1846 = vadd.f32 %v1840, %v1802
        %v1847 = vadd.f32 %v1841, %v1805
        %v1848 = vadd.f32 %v1842, %v1808
        %v1849 = vadd.f32 %v1843, %v1811
        %v1850 = vadd.f32 %v1844, %v1814
        %v1851 = vadd.f32 %v1845, %v1817
        %v1852 = vadd.f32 %v1846, %v1820
        %v1853 = vadd.f32 %v1847, %v1823
        %v1854 = vxor.u32 %v1848, 2147483648
        %v1855 = vxor.u32 %v1849, 2147483648
        %v1856 = vxor.u32 %v1850, 2147483648
        %v1857 = vxor.u32 %v1851, 2147483648
        %v1858 = vxor.u32 %v1852, 2147483648
        %v1859 = vxor.u32 %v1853, 2147483648
        %v1860 = vmul.f32 %v1854, 1.442695
        %v1861 = vpow.pop %v1860
        %v1862 = vmul.f32 %v1855, 1.442695
        %v1863 = vpow.pop %v1862
        %v1864 = vmul.f32 %v1856, 1.442695
        %v1865 = vpow.pop %v1864
        %v1866 = vmul.f32 %v1857, 1.442695
        %v1867 = vpow.pop %v1866
        %v1868 = vmul.f32 %v1858, 1.442695
        %v1869 = vpow.pop %v1868
        %v1870 = vmul.f32 %v1859, 1.442695
        %v1871 = vpow.pop %v1870
        %v1872 = vadd.f32 %v1861, 1.0
        %v1873 = vadd.f32 %v1863, 1.0
        %v1874 = vadd.f32 %v1865, 1.0
        %v1875 = vadd.f32 %v1867, 1.0
        %v1876 = vadd.f32 %v1869, 1.0
        %v1877 = vadd.f32 %v1871, 1.0
        %v1878 = vrcp.pop %v1872
        %v1879 = vmul.f32 1.0, %v1878
        %v1880 = vrcp.pop %v1873
        %v1881 = vmul.f32 1.0, %v1880
        %v1882 = vrcp.pop %v1874
        %v1883 = vmul.f32 1.0, %v1882
        %v1884 = vrcp.pop %v1875
        %v1885 = vmul.f32 1.0, %v1884
        %v1886 = vrcp.pop %v1876
        %v1887 = vmul.f32 1.0, %v1886
        %v1888 = vrcp.pop %v1877
        %v1889 = vmul.f32 1.0, %v1888
        %1891 = vset.pattern.permute.xlu0 0
        %1892 = vperm.xlu0 %1891, %v1879
        %v1893 = vpop.permute.xlu0 %1892
        %1896 = vset.pattern.permute.xlu0 0
        %1897 = vperm.xlu0 %1896, %v1881
        %v1898 = vpop.permute.xlu0 %1897
        %v1900 = vmul.f32 %v1893, %v470
        %v1901 = vmul.f32 %v1893, %v471
        %v1902 = vmul.f32 %v1898, %v472
        %v1903 = vmul.f32 %v1898, %v473
        %1904 = vst [vmem:[%s440] sm:$0xff] %v1900
        %1905 = vst [vmem:[%s440 + $0x8] sm:$0xff] %v1901
        %1906 = vst [vmem:[%s440 + $0x10] sm:$0xff] %v1902
        %1907 = vst [vmem:[%s440 + $0x18] sm:$0xff] %v1903
        %v1908 = vld [vmem:[%s464] sm:$0xff]
        %v1909 = vld [vmem:[%s464 + $0x8] sm:$0xff]
        %v1910 = vld [vmem:[%s464 + $0x10] sm:$0xff]
        %v1911 = vld [vmem:[%s464 + $0x18] sm:$0xff]
        %1913 = vset.pattern.permute.xlu0 0
        %1914 = vperm.xlu0 %1913, %v1883
        %v1915 = vpop.permute.xlu0 %1914
        %1918 = vset.pattern.permute.xlu0 0
        %1919 = vperm.xlu0 %1918, %v1885
        %v1920 = vpop.permute.xlu0 %1919
        %v1922 = vmul.f32 %v1915, %v1908
        %v1923 = vmul.f32 %v1915, %v1909
        %v1924 = vmul.f32 %v1920, %v1910
        %v1925 = vmul.f32 %v1920, %v1911
        %1926 = vst [vmem:[%s447] sm:$0xff] %v1922
        %1927 = vst [vmem:[%s447 + $0x8] sm:$0xff] %v1923
        %1928 = vst [vmem:[%s447 + $0x10] sm:$0xff] %v1924
        %1929 = vst [vmem:[%s447 + $0x18] sm:$0xff] %v1925
        %v1930 = vld [vmem:[%s469] sm:$0xff]
        %v1931 = vld [vmem:[%s469 + $0x8] sm:$0xff]
        %v1932 = vld [vmem:[%s469 + $0x10] sm:$0xff]
        %v1933 = vld [vmem:[%s469 + $0x18] sm:$0xff]
        %1935 = vset.pattern.permute.xlu0 0
        %1936 = vperm.xlu0 %1935, %v1887
        %v1937 = vpop.permute.xlu0 %1936
        %1940 = vset.pattern.permute.xlu0 0
        %1941 = vperm.xlu0 %1940, %v1889
        %v1942 = vpop.permute.xlu0 %1941
        %v1944 = vmul.f32 %v1937, %v1930
        %v1945 = vmul.f32 %v1937, %v1931
        %v1946 = vmul.f32 %v1942, %v1932
        %v1947 = vmul.f32 %v1942, %v1933
        %1948 = vst [vmem:[%s454] sm:$0xff] %v1944
        %1949 = vst [vmem:[%s454 + $0x8] sm:$0xff] %v1945
        %1950 = vst [vmem:[%s454 + $0x10] sm:$0xff] %v1946
        %1951 = vst [vmem:[%s454 + $0x18] sm:$0xff] %v1947
        %s1952 = sand.u32 %s263, 1
        %s1953 = scalar_lea.sflag [#allocation3], %s1952
        %s1954 = sand.u32 %s263, 1
        %s1955 = smul.addr %s1954, 32
        %s1956 = scalar_lea.vmem [#allocation2], %s1955
        %s1957 = sand.u32 %s30, 1
        %s1958 = scalar_lea.sflag [#allocation5], %s1957
        %s1959 = sand.u32 %s289, 1
        %s1960 = smul.addr %s1959, 32
        %s1961 = scalar_lea.vmem [#allocation4], %s1960
        %s1962 = sand.u32 %s30, 1
        %s1963 = scalar_lea.sflag [#allocation5], %s1962
        %s1964 = sand.u32 %s315, 1
        %s1965 = smul.addr %s1964, 32
        %s1966 = scalar_lea.vmem [#allocation6], %s1965
        // Predicated region
        $region61: #{tpu_custom_call.1} parent=59 // pred_check
          %p1967 = pneg %p273
        $region62: #{tpu_custom_call.1} parent=59 // pred_check_branch
          %1969 = sbr.rel (%p1967) target = $region64
        $region63: #{tpu_custom_call.1} parent=59 // pred_region
          %s1971 = ssub.s32 512, 512
          %1972 = vsyncadd %s1953, %s1971
          %s1973 = smul.addr %s30, 4
          %s1974 = smul.addr %s1973, 128
          %s1975 = scalar_lea.hbm %s10, %s1974
          %s1976 = sshll.u32 %s1956, 4
          %s1977 = int_to_ptr.vmem [resolvable:$true] %s1976
          %1982 = dma.vmem_to_hbm [thread:$0]  %s1977, 512, %s1975, %s1953, 256, 256, 16
        $region64: #{tpu_custom_call.1} parent=59 // pred_fallthru
          _
        // Predicated region
        $region65: #{tpu_custom_call.1} parent=59 // pred_check
          %p1983 = pneg %p299
        $region66: #{tpu_custom_call.1} parent=59 // pred_check_branch
          %1985 = sbr.rel (%p1983) target = $region68
        $region67: #{tpu_custom_call.1} parent=59 // pred_region
          %s1987 = ssub.s32 512, 512
          %1988 = vsyncadd %s1958, %s1987
          %s1989 = smul.addr %s30, 4
          %s1990 = smul.addr %s1989, 128
          %s1991 = scalar_lea.hbm %s11, %s1990
          %s1992 = sshll.u32 %s1961, 4
          %s1993 = int_to_ptr.vmem [resolvable:$true] %s1992
          %1998 = dma.vmem_to_hbm [thread:$0]  %s1993, 512, %s1991, %s1958, 256, 256, 16
        $region68: #{tpu_custom_call.1} parent=59 // pred_fallthru
          _
        // Predicated region
        $region69: #{tpu_custom_call.1} parent=59 // pred_check
          %p1999 = pneg %p325
        $region70: #{tpu_custom_call.1} parent=59 // pred_check_branch
          %2001 = sbr.rel (%p1999) target = $region72
        $region71: #{tpu_custom_call.1} parent=59 // pred_region
          %s2003 = ssub.s32 512, 512
          %2004 = vsyncadd %s1963, %s2003
          %s2005 = smul.addr %s30, 4
          %s2006 = smul.addr %s2005, 128
          %s2007 = scalar_lea.hbm %s12, %s2006
          %s2008 = sshll.u32 %s1966, 4
          %s2009 = int_to_ptr.vmem [resolvable:$true] %s2008
          %2014 = dma.vmem_to_hbm [thread:$0]  %s2009, 512, %s2007, %s1963, 256, 256, 16
        $region72: #{tpu_custom_call.1} parent=59 // pred_fallthru
          _
      $region60: #{tpu_custom_call.1} parent=5 // pred_fallthru
        _
      %p2015 = scmp.le.s32.totalorder 2, %s25
      // Predicated region
      $region73: #{tpu_custom_call.1} parent=5 // pred_check
        %p2016 = pneg %p2015
      $region74: #{tpu_custom_call.1} parent=5 // pred_check_branch
        %2018 = sbr.rel (%p2016) target = $region76
      $region75: #{tpu_custom_call.1} parent=5 // pred_region
        %s2019 = ssub.s32 %s25, 2
        // Predicated region
        $region77: #{tpu_custom_call.1} parent=75 // pred_check
          %p2020 = pneg %p279
        $region78: #{tpu_custom_call.1} parent=75 // pred_check_branch
          %2022 = sbr.rel (%p2020) target = $region80
        $region79: #{tpu_custom_call.1} parent=75 // pred_region
          %s2023 = sand.u32 %s264, 1
          %s2024 = scalar_lea.sflag [#allocation3], %s2023
          %s2025 = sand.u32 %s264, 1
          %s2026 = smul.addr %s2025, 32
          %s2027 = scalar_lea.vmem [#allocation2], %s2026
          %2028 = dma.done %s2024, 512
        $region80: #{tpu_custom_call.1} parent=75 // pred_fallthru
          _
        // Predicated region
        $region81: #{tpu_custom_call.1} parent=75 // pred_check
          %p2029 = pneg %p305
        $region82: #{tpu_custom_call.1} parent=75 // pred_check_branch
          %2031 = sbr.rel (%p2029) target = $region84
        $region83: #{tpu_custom_call.1} parent=75 // pred_region
          %s2032 = sand.u32 %s31, 1
          %s2033 = scalar_lea.sflag [#allocation5], %s2032
          %s2034 = sand.u32 %s290, 1
          %s2035 = smul.addr %s2034, 32
          %s2036 = scalar_lea.vmem [#allocation4], %s2035
          %2037 = dma.done %s2033, 512
        $region84: #{tpu_custom_call.1} parent=75 // pred_fallthru
          _
        // Predicated region
        $region85: #{tpu_custom_call.1} parent=75 // pred_check
          %p2038 = pneg %p331
        $region86: #{tpu_custom_call.1} parent=75 // pred_check_branch
          %2040 = sbr.rel (%p2038) target = $region88
        $region87: #{tpu_custom_call.1} parent=75 // pred_region
          %s2041 = sand.u32 %s31, 1
          %s2042 = scalar_lea.sflag [#allocation5], %s2041
          %s2043 = sand.u32 %s316, 1
          %s2044 = smul.addr %s2043, 32
          %s2045 = scalar_lea.vmem [#allocation6], %s2044
          %2046 = dma.done %s2042, 512
        $region88: #{tpu_custom_call.1} parent=75 // pred_fallthru
          _
      $region76: #{tpu_custom_call.1} parent=5 // pred_fallthru
        _
    $region6: #{tpu_custom_call.1} parent=1 // loop_footer
      %s29 = sadd.s32 1, %s25
    $region7: #{tpu_custom_call.1} parent=1 // loop_footer_branch
      %24 = sbr.rel target = $region3
    $region8: #{tpu_custom_call.1} parent=1 // loop_exit
      _
    %2047 = vsyncpa [#allocation3], 1
    %s2048 = scalar_lea.sflag [#allocation3], 1
    %2049 = vsyncpa %s2048, 1
    %2050 = vsyncpa [#allocation5], 1
    %s2051 = scalar_lea.sflag [#allocation5], 1
    %2052 = vsyncpa %s2051, 1

</llo_original>
